<compile_context>
chip_gen: v7x
topology: tpu7x:2x2x1
jax: 0.10.0
libtpu: 0.0.40
codegen_flags: <defaults>
</compile_context>

<pallas_src>
import jax
import jax.numpy as jnp
from jax import lax
from jax.experimental import pallas as pl
from jax.experimental.pallas import tpu as pltpu

BN_EPS = 1e-5
CP = 128  # padded channel width (lane-dense)

# Static architecture constants (never traced).
ARCH = [
    {"out_dim": 32, "kernel_size": 8, "stride": 4},
    {"out_dim": 64, "kernel_size": 4, "stride": 2},
    {"out_dim": 64, "kernel_size": 3, "stride": 1},
]


# ----------------------------- fused Pallas kernel ------------------------------


def _make_fused_kernel(batch, oh1, ow1):
    """Build the fused conv1->conv2->conv3->Linear kernel.

    Activations are kept as (rows, 128) f32 matrices with rows ordered (h, w, b) and the
    channel (lane) axis zero-padded to 128.
    """
    k2, s2 = ARCH[1]["kernel_size"], ARCH[1]["stride"]
    k3, s3 = ARCH[2]["kernel_size"], ARCH[2]["stride"]
    oh2, ow2 = (oh1 - k2) // s2 + 1, (ow1 - k2) // s2 + 1
    oh3, ow3 = (oh2 - k3) // s3 + 1, (ow2 - k3) // s3 + 1
    # Flatten-is-identity simplification (true for the 36x36 BasicCNN input).
    assert oh3 == 1 and ow3 == 1, "fused BasicCNN head expects 1x1 spatial after conv3"

    def bn_relu(y, g_ref, b_ref):
        # Training-mode BatchNorm2d over all rows (= N,H,W), biased variance, fused with ReLU.
        m = y.shape[0]
        mean = jnp.sum(y, axis=0, keepdims=True) * (1.0 / m)
        var = jnp.sum(y * y, axis=0, keepdims=True) * (1.0 / m) - mean * mean
        scale = g_ref[...] * lax.rsqrt(var + BN_EPS)
        shift = b_ref[...] - mean * scale
        return jnp.maximum(y * scale + shift, 0.0)

    def conv_from_rows(a, ih, iw, w_ref, k, s):
        """a: (ih*iw*batch, CP) activation (rows ordered (h, w, b)).  Builds the im2col patch
        matrix with static slices + lane-aligned concats and runs one MXU matmul."""
        oh, ow = (ih - k) // s + 1, (iw - k) // s + 1
        pos_patches = []
        for y in range(oh):
            for x in range(ow):
                chunks = [
                    a[((s * y + i) * iw + (s * x + j)) * batch:
                      ((s * y + i) * iw + (s * x + j)) * batch + batch, :]
                    for i in range(k) for j in range(k)
                ]
                pos_patches.append(jnp.concatenate(chunks, axis=1))   # (batch, k*k*CP)
        p = jnp.concatenate(pos_patches, axis=0)                       # (oh*ow*batch, k*k*CP)
        return jnp.dot(p, w_ref[...], preferred_element_type=jnp.float32), oh, ow

    def kernel(p1_ref, w1_ref, g1_ref, b1_ref,
               w2_ref, g2_ref, b2_ref,
               w3_ref, g3_ref, b3_ref,
               wfc_ref, bfc_ref, out_ref):
        # layer 1: im2col patches were built outside (they depend only on the network input)
        y1 = jnp.dot(p1_ref[...], w1_ref[...], preferred_element_type=jnp.float32)
        a1 = bn_relu(y1, g1_ref, b1_ref)                 # (oh1*ow1*batch, CP)

        # layer 2 (patches built in-kernel from VMEM-resident a1)
        y2, ih3, iw3 = conv_from_rows(a1, oh1, ow1, w2_ref, k2, s2)
        a2 = bn_relu(y2, g2_ref, b2_ref)                 # (oh2*ow2*batch, CP)

        # layer 3 (1x1 output -> rows already ordered by batch)
        y3, _, _ = conv_from_rows(a2, ih3, iw3, w3_ref, k3, s3)
        a3 = bn_relu(y3, g3_ref, b3_ref)                 # (batch, CP)

        # Flatten is the identity here (1x1 spatial).  Dense head, lane-dense (padded) output.
        out_ref[...] = (
            jnp.dot(a3, wfc_ref[...], preferred_element_type=jnp.float32) + bfc_ref[...]
        )

    return kernel


# ------------------------------- weight preparation ------------------------------


def _pad_row(v, n=CP, value=0.0):
    return jnp.pad(v, (0, n - v.shape[0]), constant_values=value).reshape(1, n)


def _prep_first_conv_w(w):
    """(OC, C, kh, kw) -> (C*kh*kw, CP): columns ordered (C, kh, kw) = torch .reshape(OC, -1)."""
    oc = w.shape[0]
    m = w.reshape(oc, -1).T
    return jnp.pad(m, ((0, 0), (0, CP - oc)))


def _prep_inner_conv_w(w):
    """(OC, C, kh, kw) -> (kh*kw*CP, CP): rows ordered (kh, kw, c_padded), cols = oc_padded."""
    oc, c, kh, kw = w.shape
    m = jnp.transpose(w, (2, 3, 1, 0))                               # (kh, kw, C, OC)
    m = jnp.pad(m, ((0, 0), (0, 0), (0, CP - c), (0, CP - oc)))
    return m.reshape(kh * kw * CP, CP)


# ----------------------------------- forward -------------------------------------


@jax.jit
def basic_cnn_forward(params, x):
    """BasicCNN.forward(x) -> representation.  x: (N, C, H, W) float32 in [0, 1]."""
    # TODO(synk): warn_on_non_image_tensor is a host-side Python warning helper (no device
    # compute); skipped.
    n, c, h, w = x.shape
    k1, s1 = ARCH[0]["kernel_size"], ARCH[0]["stride"]
    oh1, ow1 = (h - k1) // s1 + 1, (w - k1) // s1 + 1

    # Layer-1 im2col via one XLA op; feature order is (C, kh, kw), matching the torch weight
    # flatten order.  Rows are laid out (oh, ow, b) so the kernel can slice "spatial position
    # across batch" contiguously.
    patches = lax.conv_general_dilated_patches(
        x, filter_shape=(k1, k1), window_strides=(s1, s1), padding="VALID",
        dimension_numbers=("NCHW", "OIHW", "NCHW"))                  # (N, C*k*k, OH, OW)
    p1 = patches.transpose(2, 3, 0, 1).reshape(oh1 * ow1 * n, c * k1 * k1)

    c1, c2, c3 = params["convs"]
    w1 = _prep_first_conv_w(c1["w"])
    w2 = _prep_inner_conv_w(c2["w"])
    w3 = _prep_inner_conv_w(c3["w"])
    g1, b1 = _pad_row(c1["gamma"], value=1.0), _pad_row(c1["beta"])
    g2, b2 = _pad_row(c2["gamma"], value=1.0), _pad_row(c2["beta"])
    g3, b3 = _pad_row(c3["gamma"], value=1.0), _pad_row(c3["beta"])
    dense_in, rep_dim = params["fc_w"].shape
    wfc = jnp.pad(params["fc_w"], ((0, CP - dense_in), (0, CP - rep_dim)))
    bfc = _pad_row(params["fc_b"])
    # NOTE: conv biases (c*["b"]) are intentionally not passed: training-mode BN cancels them.

    vmem = pl.BlockSpec(memory_space=pltpu.MemorySpace.VMEM)
    out = pl.pallas_call(
        _make_fused_kernel(n, oh1, ow1),
        out_shape=jax.ShapeDtypeStruct((n, CP), jnp.float32),
        in_specs=[vmem] * 12,
        out_specs=vmem,
    )(p1, w1, g1, b1, w2, g2, b2, w3, g3, b3, wfc, bfc)
    # NOTE: at large batch this single-block design must tile the row axis (grid over M,
    # dimension_semantics=("parallel",) for v7x's two cores) with cross-tile BN statistics.
    return out[:, :rep_dim]


# ------------------------------ pure-JAX reference --------------------------------


def basic_cnn_reference(params, x):
    """Straightforward JAX replica of the PyTorch forward (keeps the cancelled conv bias)."""
    h = x
    for spec, layer in zip(ARCH, params["convs"]):
        s = spec["stride"]
        h = lax.conv_general_dilated(h, layer["w"], (s, s), "VALID",
                                     dimension_numbers=("NCHW", "OIHW", "NCHW"))
        h = h + layer["b"][None, :, None, None]
        mean = jnp.mean(h, axis=(0, 2, 3), keepdims=True)
        var = jnp.mean(jnp.square(h - mean), axis=(0, 2, 3), keepdims=True)   # biased
        h = (h - mean) * lax.rsqrt(var + BN_EPS)
        h = h * layer["gamma"][None, :, None, None] + layer["beta"][None, :, None, None]
        h = jnp.maximum(h, 0.0)
    flat = h.reshape(h.shape[0], -1)
    return flat @ params["fc_w"] + params["fc_b"]


# ------------------------------------ params --------------------------------------


def init_params(key, in_channels, representation_dim):
    params = {"convs": []}
    c = in_channels
    for spec in ARCH:
        oc, k = spec["out_dim"], spec["kernel_size"]
        key, kw_, kb_ = jax.random.split(key, 3)
        params["convs"].append({
            "w": jax.random.normal(kw_, (oc, c, k, k), jnp.float32) * 0.05,
            "b": jax.random.normal(kb_, (oc,), jnp.float32) * 0.01,
            "gamma": jnp.ones((oc,), jnp.float32),   # BatchNorm2d default affine init
            "beta": jnp.zeros((oc,), jnp.float32),
        })
        c = oc
    dense_in = ARCH[-1]["out_dim"]                   # conv3 output is (64, 1, 1) for 36x36 input
    key, kw_, kb_ = jax.random.split(key, 3)
    params["fc_w"] = jax.random.normal(kw_, (dense_in, representation_dim), jnp.float32) * 0.05
    params["fc_b"] = jax.random.normal(kb_, (representation_dim,), jnp.float32) * 0.01
    return params


if __name__ == "__main__":
    key = jax.random.PRNGKey(0)
    k_x, k_p = jax.random.split(key)

    batch, channels, spatial = 2, 4, 36   # 36x36 is the smallest square input BasicCNN accepts
    representation_dim = 32

    x = jax.random.uniform(k_x, (batch, channels, spatial, spatial), jnp.float32)  # [0, 1] images
    params = init_params(k_p, channels, representation_dim)

    rep = basic_cnn_forward(params, x)
    jax.block_until_ready(rep)

    assert rep.shape == (batch, representation_dim), rep.shape
    assert bool(jnp.all(jnp.isfinite(rep)))

    ref = basic_cnn_reference(params, x)
    err = float(jnp.max(jnp.abs(rep - ref)))
    assert err < 2e-2, f"mismatch vs pure-JAX reference: max abs err = {err}"

    print("KERNEL_OK")
</pallas_src>

<mosaic_0001>
module attributes {stable_mosaic.version = 11 : i64} {
  func.func @kernel(%arg0: memref<128x256xf32, #tpu.memory_space<vmem>>, %arg1: memref<256x128xf32, #tpu.memory_space<vmem>>, %arg2: memref<1x128xf32, #tpu.memory_space<vmem>>, %arg3: memref<1x128xf32, #tpu.memory_space<vmem>>, %arg4: memref<2048x128xf32, #tpu.memory_space<vmem>>, %arg5: memref<1x128xf32, #tpu.memory_space<vmem>>, %arg6: memref<1x128xf32, #tpu.memory_space<vmem>>, %arg7: memref<1152x128xf32, #tpu.memory_space<vmem>>, %arg8: memref<1x128xf32, #tpu.memory_space<vmem>>, %arg9: memref<1x128xf32, #tpu.memory_space<vmem>>, %arg10: memref<128x128xf32, #tpu.memory_space<vmem>>, %arg11: memref<1x128xf32, #tpu.memory_space<vmem>>, %arg12: memref<2x128xf32, #tpu.memory_space<vmem>>) attributes {dimension_semantics = [], scalar_prefetch = 0 : i64, scratch_operands = 0 : i64, tpu.core_type = #tpu.core_type<tc>} {
    %c0 = arith.constant 0 : index
    %c0_0 = arith.constant 0 : index
    %0 = vector.load %arg0[%c0, %c0_0] : memref<128x256xf32, #tpu.memory_space<vmem>>, vector<128x256xf32>
    %c0_1 = arith.constant 0 : index
    %c0_2 = arith.constant 0 : index
    %1 = vector.load %arg1[%c0_1, %c0_2] : memref<256x128xf32, #tpu.memory_space<vmem>>, vector<256x128xf32>
    %cst = arith.constant dense<0.000000e+00> : vector<128x128xf32>
    %2 = tpu.matmul %0, %1, %cst {dimension_numbers = #tpu.dot_dimension_numbers<[1], [0], [0], [1], [0, 0, 1, 1], [], []>} : vector<128x256xf32>, vector<256x128xf32>, vector<128x128xf32> -> vector<128x128xf32>
    %cst_3 = arith.constant dense<0.000000e+00> : vector<128xf32>
    %3 = vector.multi_reduction <add>, %2, %cst_3 [0] : vector<128x128xf32> to vector<128xf32>
    %4 = vector.shape_cast %3 : vector<128xf32> to vector<1x128xf32>
    %cst_4 = arith.constant 7.812500e-03 : f32
    %5 = vector.broadcast %cst_4 : f32 to vector<1x128xf32>
    %6 = arith.mulf %4, %5 : vector<1x128xf32>
    %7 = arith.mulf %2, %2 : vector<128x128xf32>
    %cst_5 = arith.constant dense<0.000000e+00> : vector<128xf32>
    %8 = vector.multi_reduction <add>, %7, %cst_5 [0] : vector<128x128xf32> to vector<128xf32>
    %9 = vector.shape_cast %8 : vector<128xf32> to vector<1x128xf32>
    %cst_6 = arith.constant 7.812500e-03 : f32
    %10 = vector.broadcast %cst_6 : f32 to vector<1x128xf32>
    %11 = arith.mulf %9, %10 : vector<1x128xf32>
    %12 = arith.mulf %6, %6 : vector<1x128xf32>
    %13 = arith.subf %11, %12 : vector<1x128xf32>
    %c0_7 = arith.constant 0 : index
    %c0_8 = arith.constant 0 : index
    %14 = vector.load %arg2[%c0_7, %c0_8] : memref<1x128xf32, #tpu.memory_space<vmem>>, vector<1x128xf32>
    %cst_9 = arith.constant 9.99999974E-6 : f32
    %15 = vector.broadcast %cst_9 : f32 to vector<1x128xf32>
    %16 = arith.addf %13, %15 : vector<1x128xf32>
    %17 = math.rsqrt %16 : vector<1x128xf32>
    %18 = arith.mulf %14, %17 : vector<1x128xf32>
    %c0_10 = arith.constant 0 : index
    %c0_11 = arith.constant 0 : index
    %19 = vector.load %arg3[%c0_10, %c0_11] : memref<1x128xf32, #tpu.memory_space<vmem>>, vector<1x128xf32>
    %20 = arith.mulf %6, %18 : vector<1x128xf32>
    %21 = arith.subf %19, %20 : vector<1x128xf32>
    %22 = vector.broadcast %18 : vector<1x128xf32> to vector<128x128xf32>
    %23 = arith.mulf %2, %22 : vector<128x128xf32>
    %24 = vector.broadcast %21 : vector<1x128xf32> to vector<128x128xf32>
    %25 = arith.addf %23, %24 : vector<128x128xf32>
    %cst_12 = arith.constant 0.000000e+00 : f32
    %26 = vector.broadcast %cst_12 : f32 to vector<128x128xf32>
    %27 = arith.maximumf %25, %26 : vector<128x128xf32>
    %28 = vector.extract_strided_slice %27 {offsets = [0, 0], sizes = [2, 128], strides = [1, 1]} : vector<128x128xf32> to vector<2x128xf32>
    %29 = vector.extract_strided_slice %27 {offsets = [2, 0], sizes = [2, 128], strides = [1, 1]} : vector<128x128xf32> to vector<2x128xf32>
    %30 = vector.extract_strided_slice %27 {offsets = [4, 0], sizes = [2, 128], strides = [1, 1]} : vector<128x128xf32> to vector<2x128xf32>
    %31 = vector.extract_strided_slice %27 {offsets = [6, 0], sizes = [2, 128], strides = [1, 1]} : vector<128x128xf32> to vector<2x128xf32>
    %32 = vector.extract_strided_slice %27 {offsets = [16, 0], sizes = [2, 128], strides = [1, 1]} : vector<128x128xf32> to vector<2x128xf32>
    %33 = vector.extract_strided_slice %27 {offsets = [18, 0], sizes = [2, 128], strides = [1, 1]} : vector<128x128xf32> to vector<2x128xf32>
    %34 = vector.extract_strided_slice %27 {offsets = [20, 0], sizes = [2, 128], strides = [1, 1]} : vector<128x128xf32> to vector<2x128xf32>
    %35 = vector.extract_strided_slice %27 {offsets = [22, 0], sizes = [2, 128], strides = [1, 1]} : vector<128x128xf32> to vector<2x128xf32>
    %36 = vector.extract_strided_slice %27 {offsets = [32, 0], sizes = [2, 128], strides = [1, 1]} : vector<128x128xf32> to vector<2x128xf32>
    %37 = vector.extract_strided_slice %27 {offsets = [34, 0], sizes = [2, 128], strides = [1, 1]} : vector<128x128xf32> to vector<2x128xf32>
    %38 = vector.extract_strided_slice %27 {offsets = [36, 0], sizes = [2, 128], strides = [1, 1]} : vector<128x128xf32> to vector<2x128xf32>
    %39 = vector.extract_strided_slice %27 {offsets = [38, 0], sizes = [2, 128], strides = [1, 1]} : vector<128x128xf32> to vector<2x128xf32>
    %40 = vector.extract_strided_slice %27 {offsets = [48, 0], sizes = [2, 128], strides = [1, 1]} : vector<128x128xf32> to vector<2x128xf32>
    %41 = vector.extract_strided_slice %27 {offsets = [50, 0], sizes = [2, 128], strides = [1, 1]} : vector<128x128xf32> to vector<2x128xf32>
    %42 = vector.extract_strided_slice %27 {offsets = [52, 0], sizes = [2, 128], strides = [1, 1]} : vector<128x128xf32> to vector<2x128xf32>
    %43 = vector.extract_strided_slice %27 {offsets = [54, 0], sizes = [2, 128], strides = [1, 1]} : vector<128x128xf32> to vector<2x128xf32>
    %44 = tpu.concatenate %28, %29, %30, %31, %32, %33, %34, %35, %36, %37, %38, %39, %40, %41, %42, %43 in 1 : vector<2x128xf32>, vector<2x128xf32>, vector<2x128xf32>, vector<2x128xf32>, vector<2x128xf32>, vector<2x128xf32>, vector<2x128xf32>, vector<2x128xf32>, vector<2x128xf32>, vector<2x128xf32>, vector<2x128xf32>, vector<2x128xf32>, vector<2x128xf32>, vector<2x128xf32>, vector<2x128xf32>, vector<2x128xf32> -> vector<2x2048xf32>
    %45 = vector.extract_strided_slice %27 {offsets = [4, 0], sizes = [2, 128], strides = [1, 1]} : vector<128x128xf32> to vector<2x128xf32>
    %46 = vector.extract_strided_slice %27 {offsets = [6, 0], sizes = [2, 128], strides = [1, 1]} : vector<128x128xf32> to vector<2x128xf32>
    %47 = vector.extract_strided_slice %27 {offsets = [8, 0], sizes = [2, 128], strides = [1, 1]} : vector<128x128xf32> to vector<2x128xf32>
    %48 = vector.extract_strided_slice %27 {offsets = [10, 0], sizes = [2, 128], strides = [1, 1]} : vector<128x128xf32> to vector<2x128xf32>
    %49 = vector.extract_strided_slice %27 {offsets = [20, 0], sizes = [2, 128], strides = [1, 1]} : vector<128x128xf32> to vector<2x128xf32>
    %50 = vector.extract_strided_slice %27 {offsets = [22, 0], sizes = [2, 128], strides = [1, 1]} : vector<128x128xf32> to vector<2x128xf32>
    %51 = vector.extract_strided_slice %27 {offsets = [24, 0], sizes = [2, 128], strides = [1, 1]} : vector<128x128xf32> to vector<2x128xf32>
    %52 = vector.extract_strided_slice %27 {offsets = [26, 0], sizes = [2, 128], strides = [1, 1]} : vector<128x128xf32> to vector<2x128xf32>
    %53 = vector.extract_strided_slice %27 {offsets = [36, 0], sizes = [2, 128], strides = [1, 1]} : vector<128x128xf32> to vector<2x128xf32>
    %54 = vector.extract_strided_slice %27 {offsets = [38, 0], sizes = [2, 128], strides = [1, 1]} : vector<128x128xf32> to vector<2x128xf32>
    %55 = vector.extract_strided_slice %27 {offsets = [40, 0], sizes = [2, 128], strides = [1, 1]} : vector<128x128xf32> to vector<2x128xf32>
    %56 = vector.extract_strided_slice %27 {offsets = [42, 0], sizes = [2, 128], strides = [1, 1]} : vector<128x128xf32> to vector<2x128xf32>
    %57 = vector.extract_strided_slice %27 {offsets = [52, 0], sizes = [2, 128], strides = [1, 1]} : vector<128x128xf32> to vector<2x128xf32>
    %58 = vector.extract_strided_slice %27 {offsets = [54, 0], sizes = [2, 128], strides = [1, 1]} : vector<128x128xf32> to vector<2x128xf32>
    %59 = vector.extract_strided_slice %27 {offsets = [56, 0], sizes = [2, 128], strides = [1, 1]} : vector<128x128xf32> to vector<2x128xf32>
    %60 = vector.extract_strided_slice %27 {offsets = [58, 0], sizes = [2, 128], strides = [1, 1]} : vector<128x128xf32> to vector<2x128xf32>
    %61 = tpu.concatenate %45, %46, %47, %48, %49, %50, %51, %52, %53, %54, %55, %56, %57, %58, %59, %60 in 1 : vector<2x128xf32>, vector<2x128xf32>, vector<2x128xf32>, vector<2x128xf32>, vector<2x128xf32>, vector<2x128xf32>, vector<2x128xf32>, vector<2x128xf32>, vector<2x128xf32>, vector<2x128xf32>, vector<2x128xf32>, vector<2x128xf32>, vector<2x128xf32>, vector<2x128xf32>, vector<2x128xf32>, vector<2x128xf32> -> vector<2x2048xf32>
    %62 = vector.extract_strided_slice %27 {offsets = [8, 0], sizes = [2, 128], strides = [1, 1]} : vector<128x128xf32> to vector<2x128xf32>
    %63 = vector.extract_strided_slice %27 {offsets = [10, 0], sizes = [2, 128], strides = [1, 1]} : vector<128x128xf32> to vector<2x128xf32>
    %64 = vector.extract_strided_slice %27 {offsets = [12, 0], sizes = [2, 128], strides = [1, 1]} : vector<128x128xf32> to vector<2x128xf32>
    %65 = vector.extract_strided_slice %27 {offsets = [14, 0], sizes = [2, 128], strides = [1, 1]} : vector<128x128xf32> to vector<2x128xf32>
    %66 = vector.extract_strided_slice %27 {offsets = [24, 0], sizes = [2, 128], strides = [1, 1]} : vector<128x128xf32> to vector<2x128xf32>
    %67 = vector.extract_strided_slice %27 {offsets = [26, 0], sizes = [2, 128], strides = [1, 1]} : vector<128x128xf32> to vector<2x128xf32>
    %68 = vector.extract_strided_slice %27 {offsets = [28, 0], sizes = [2, 128], strides = [1, 1]} : vector<128x128xf32> to vector<2x128xf32>
    %69 = vector.extract_strided_slice %27 {offsets = [30, 0], sizes = [2, 128], strides = [1, 1]} : vector<128x128xf32> to vector<2x128xf32>
    %70 = vector.extract_strided_slice %27 {offsets = [40, 0], sizes = [2, 128], strides = [1, 1]} : vector<128x128xf32> to vector<2x128xf32>
    %71 = vector.extract_strided_slice %27 {offsets = [42, 0], sizes = [2, 128], strides = [1, 1]} : vector<128x128xf32> to vector<2x128xf32>
    %72 = vector.extract_strided_slice %27 {offsets = [44, 0], sizes = [2, 128], strides = [1, 1]} : vector<128x128xf32> to vector<2x128xf32>
    %73 = vector.extract_strided_slice %27 {offsets = [46, 0], sizes = [2, 128], strides = [1, 1]} : vector<128x128xf32> to vector<2x128xf32>
    %74 = vector.extract_strided_slice %27 {offsets = [56, 0], sizes = [2, 128], strides = [1, 1]} : vector<128x128xf32> to vector<2x128xf32>
    %75 = vector.extract_strided_slice %27 {offsets = [58, 0], sizes = [2, 128], strides = [1, 1]} : vector<128x128xf32> to vector<2x128xf32>
    %76 = vector.extract_strided_slice %27 {offsets = [60, 0], sizes = [2, 128], strides = [1, 1]} : vector<128x128xf32> to vector<2x128xf32>
    %77 = vector.extract_strided_slice %27 {offsets = [62, 0], sizes = [2, 128], strides = [1, 1]} : vector<128x128xf32> to vector<2x128xf32>
    %78 = tpu.concatenate %62, %63, %64, %65, %66, %67, %68, %69, %70, %71, %72, %73, %74, %75, %76, %77 in 1 : vector<2x128xf32>, vector<2x128xf32>, vector<2x128xf32>, vector<2x128xf32>, vector<2x128xf32>, vector<2x128xf32>, vector<2x128xf32>, vector<2x128xf32>, vector<2x128xf32>, vector<2x128xf32>, vector<2x128xf32>, vector<2x128xf32>, vector<2x128xf32>, vector<2x128xf32>, vector<2x128xf32>, vector<2x128xf32> -> vector<2x2048xf32>
    %79 = vector.extract_strided_slice %27 {offsets = [32, 0], sizes = [2, 128], strides = [1, 1]} : vector<128x128xf32> to vector<2x128xf32>
    %80 = vector.extract_strided_slice %27 {offsets = [34, 0], sizes = [2, 128], strides = [1, 1]} : vector<128x128xf32> to vector<2x128xf32>
    %81 = vector.extract_strided_slice %27 {offsets = [36, 0], sizes = [2, 128], strides = [1, 1]} : vector<128x128xf32> to vector<2x128xf32>
    %82 = vector.extract_strided_slice %27 {offsets = [38, 0], sizes = [2, 128], strides = [1, 1]} : vector<128x128xf32> to vector<2x128xf32>
    %83 = vector.extract_strided_slice %27 {offsets = [48, 0], sizes = [2, 128], strides = [1, 1]} : vector<128x128xf32> to vector<2x128xf32>
    %84 = vector.extract_strided_slice %27 {offsets = [50, 0], sizes = [2, 128], strides = [1, 1]} : vector<128x128xf32> to vector<2x128xf32>
    %85 = vector.extract_strided_slice %27 {offsets = [52, 0], sizes = [2, 128], strides = [1, 1]} : vector<128x128xf32> to vector<2x128xf32>
    %86 = vector.extract_strided_slice %27 {offsets = [54, 0], sizes = [2, 128], strides = [1, 1]} : vector<128x128xf32> to vector<2x128xf32>
    %87 = vector.extract_strided_slice %27 {offsets = [64, 0], sizes = [2, 128], strides = [1, 1]} : vector<128x128xf32> to vector<2x128xf32>
    %88 = vector.extract_strided_slice %27 {offsets = [66, 0], sizes = [2, 128], strides = [1, 1]} : vector<128x128xf32> to vector<2x128xf32>
    %89 = vector.extract_strided_slice %27 {offsets = [68, 0], sizes = [2, 128], strides = [1, 1]} : vector<128x128xf32> to vector<2x128xf32>
    %90 = vector.extract_strided_slice %27 {offsets = [70, 0], sizes = [2, 128], strides = [1, 1]} : vector<128x128xf32> to vector<2x128xf32>
    %91 = vector.extract_strided_slice %27 {offsets = [80, 0], sizes = [2, 128], strides = [1, 1]} : vector<128x128xf32> to vector<2x128xf32>
    %92 = vector.extract_strided_slice %27 {offsets = [82, 0], sizes = [2, 128], strides = [1, 1]} : vector<128x128xf32> to vector<2x128xf32>
    %93 = vector.extract_strided_slice %27 {offsets = [84, 0], sizes = [2, 128], strides = [1, 1]} : vector<128x128xf32> to vector<2x128xf32>
    %94 = vector.extract_strided_slice %27 {offsets = [86, 0], sizes = [2, 128], strides = [1, 1]} : vector<128x128xf32> to vector<2x128xf32>
    %95 = tpu.concatenate %79, %80, %81, %82, %83, %84, %85, %86, %87, %88, %89, %90, %91, %92, %93, %94 in 1 : vector<2x128xf32>, vector<2x128xf32>, vector<2x128xf32>, vector<2x128xf32>, vector<2x128xf32>, vector<2x128xf32>, vector<2x128xf32>, vector<2x128xf32>, vector<2x128xf32>, vector<2x128xf32>, vector<2x128xf32>, vector<2x128xf32>, vector<2x128xf32>, vector<2x128xf32>, vector<2x128xf32>, vector<2x128xf32> -> vector<2x2048xf32>
    %96 = vector.extract_strided_slice %27 {offsets = [36, 0], sizes = [2, 128], strides = [1, 1]} : vector<128x128xf32> to vector<2x128xf32>
    %97 = vector.extract_strided_slice %27 {offsets = [38, 0], sizes = [2, 128], strides = [1, 1]} : vector<128x128xf32> to vector<2x128xf32>
    %98 = vector.extract_strided_slice %27 {offsets = [40, 0], sizes = [2, 128], strides = [1, 1]} : vector<128x128xf32> to vector<2x128xf32>
    %99 = vector.extract_strided_slice %27 {offsets = [42, 0], sizes = [2, 128], strides = [1, 1]} : vector<128x128xf32> to vector<2x128xf32>
    %100 = vector.extract_strided_slice %27 {offsets = [52, 0], sizes = [2, 128], strides = [1, 1]} : vector<128x128xf32> to vector<2x128xf32>
    %101 = vector.extract_strided_slice %27 {offsets = [54, 0], sizes = [2, 128], strides = [1, 1]} : vector<128x128xf32> to vector<2x128xf32>
    %102 = vector.extract_strided_slice %27 {offsets = [56, 0], sizes = [2, 128], strides = [1, 1]} : vector<128x128xf32> to vector<2x128xf32>
    %103 = vector.extract_strided_slice %27 {offsets = [58, 0], sizes = [2, 128], strides = [1, 1]} : vector<128x128xf32> to vector<2x128xf32>
    %104 = vector.extract_strided_slice %27 {offsets = [68, 0], sizes = [2, 128], strides = [1, 1]} : vector<128x128xf32> to vector<2x128xf32>
    %105 = vector.extract_strided_slice %27 {offsets = [70, 0], sizes = [2, 128], strides = [1, 1]} : vector<128x128xf32> to vector<2x128xf32>
    %106 = vector.extract_strided_slice %27 {offsets = [72, 0], sizes = [2, 128], strides = [1, 1]} : vector<128x128xf32> to vector<2x128xf32>
    %107 = vector.extract_strided_slice %27 {offsets = [74, 0], sizes = [2, 128], strides = [1, 1]} : vector<128x128xf32> to vector<2x128xf32>
    %108 = vector.extract_strided_slice %27 {offsets = [84, 0], sizes = [2, 128], strides = [1, 1]} : vector<128x128xf32> to vector<2x128xf32>
    %109 = vector.extract_strided_slice %27 {offsets = [86, 0], sizes = [2, 128], strides = [1, 1]} : vector<128x128xf32> to vector<2x128xf32>
    %110 = vector.extract_strided_slice %27 {offsets = [88, 0], sizes = [2, 128], strides = [1, 1]} : vector<128x128xf32> to vector<2x128xf32>
    %111 = vector.extract_strided_slice %27 {offsets = [90, 0], sizes = [2, 128], strides = [1, 1]} : vector<128x128xf32> to vector<2x128xf32>
    %112 = tpu.concatenate %96, %97, %98, %99, %100, %101, %102, %103, %104, %105, %106, %107, %108, %109, %110, %111 in 1 : vector<2x128xf32>, vector<2x128xf32>, vector<2x128xf32>, vector<2x128xf32>, vector<2x128xf32>, vector<2x128xf32>, vector<2x128xf32>, vector<2x128xf32>, vector<2x128xf32>, vector<2x128xf32>, vector<2x128xf32>, vector<2x128xf32>, vector<2x128xf32>, vector<2x128xf32>, vector<2x128xf32>, vector<2x128xf32> -> vector<2x2048xf32>
    %113 = vector.extract_strided_slice %27 {offsets = [40, 0], sizes = [2, 128], strides = [1, 1]} : vector<128x128xf32> to vector<2x128xf32>
    %114 = vector.extract_strided_slice %27 {offsets = [42, 0], sizes = [2, 128], strides = [1, 1]} : vector<128x128xf32> to vector<2x128xf32>
    %115 = vector.extract_strided_slice %27 {offsets = [44, 0], sizes = [2, 128], strides = [1, 1]} : vector<128x128xf32> to vector<2x128xf32>
    %116 = vector.extract_strided_slice %27 {offsets = [46, 0], sizes = [2, 128], strides = [1, 1]} : vector<128x128xf32> to vector<2x128xf32>
    %117 = vector.extract_strided_slice %27 {offsets = [56, 0], sizes = [2, 128], strides = [1, 1]} : vector<128x128xf32> to vector<2x128xf32>
    %118 = vector.extract_strided_slice %27 {offsets = [58, 0], sizes = [2, 128], strides = [1, 1]} : vector<128x128xf32> to vector<2x128xf32>
    %119 = vector.extract_strided_slice %27 {offsets = [60, 0], sizes = [2, 128], strides = [1, 1]} : vector<128x128xf32> to vector<2x128xf32>
    %120 = vector.extract_strided_slice %27 {offsets = [62, 0], sizes = [2, 128], strides = [1, 1]} : vector<128x128xf32> to vector<2x128xf32>
    %121 = vector.extract_strided_slice %27 {offsets = [72, 0], sizes = [2, 128], strides = [1, 1]} : vector<128x128xf32> to vector<2x128xf32>
    %122 = vector.extract_strided_slice %27 {offsets = [74, 0], sizes = [2, 128], strides = [1, 1]} : vector<128x128xf32> to vector<2x128xf32>
    %123 = vector.extract_strided_slice %27 {offsets = [76, 0], sizes = [2, 128], strides = [1, 1]} : vector<128x128xf32> to vector<2x128xf32>
    %124 = vector.extract_strided_slice %27 {offsets = [78, 0], sizes = [2, 128], strides = [1, 1]} : vector<128x128xf32> to vector<2x128xf32>
    %125 = vector.extract_strided_slice %27 {offsets = [88, 0], sizes = [2, 128], strides = [1, 1]} : vector<128x128xf32> to vector<2x128xf32>
    %126 = vector.extract_strided_slice %27 {offsets = [90, 0], sizes = [2, 128], strides = [1, 1]} : vector<128x128xf32> to vector<2x128xf32>
    %127 = vector.extract_strided_slice %27 {offsets = [92, 0], sizes = [2, 128], strides = [1, 1]} : vector<128x128xf32> to vector<2x128xf32>
    %128 = vector.extract_strided_slice %27 {offsets = [94, 0], sizes = [2, 128], strides = [1, 1]} : vector<128x128xf32> to vector<2x128xf32>
    %129 = tpu.concatenate %113, %114, %115, %116, %117, %118, %119, %120, %121, %122, %123, %124, %125, %126, %127, %128 in 1 : vector<2x128xf32>, vector<2x128xf32>, vector<2x128xf32>, vector<2x128xf32>, vector<2x128xf32>, vector<2x128xf32>, vector<2x128xf32>, vector<2x128xf32>, vector<2x128xf32>, vector<2x128xf32>, vector<2x128xf32>, vector<2x128xf32>, vector<2x128xf32>, vector<2x128xf32>, vector<2x128xf32>, vector<2x128xf32> -> vector<2x2048xf32>
    %130 = vector.extract_strided_slice %27 {offsets = [64, 0], sizes = [2, 128], strides = [1, 1]} : vector<128x128xf32> to vector<2x128xf32>
    %131 = vector.extract_strided_slice %27 {offsets = [66, 0], sizes = [2, 128], strides = [1, 1]} : vector<128x128xf32> to vector<2x128xf32>
    %132 = vector.extract_strided_slice %27 {offsets = [68, 0], sizes = [2, 128], strides = [1, 1]} : vector<128x128xf32> to vector<2x128xf32>
    %133 = vector.extract_strided_slice %27 {offsets = [70, 0], sizes = [2, 128], strides = [1, 1]} : vector<128x128xf32> to vector<2x128xf32>
    %134 = vector.extract_strided_slice %27 {offsets = [80, 0], sizes = [2, 128], strides = [1, 1]} : vector<128x128xf32> to vector<2x128xf32>
    %135 = vector.extract_strided_slice %27 {offsets = [82, 0], sizes = [2, 128], strides = [1, 1]} : vector<128x128xf32> to vector<2x128xf32>
    %136 = vector.extract_strided_slice %27 {offsets = [84, 0], sizes = [2, 128], strides = [1, 1]} : vector<128x128xf32> to vector<2x128xf32>
    %137 = vector.extract_strided_slice %27 {offsets = [86, 0], sizes = [2, 128], strides = [1, 1]} : vector<128x128xf32> to vector<2x128xf32>
    %138 = vector.extract_strided_slice %27 {offsets = [96, 0], sizes = [2, 128], strides = [1, 1]} : vector<128x128xf32> to vector<2x128xf32>
    %139 = vector.extract_strided_slice %27 {offsets = [98, 0], sizes = [2, 128], strides = [1, 1]} : vector<128x128xf32> to vector<2x128xf32>
    %140 = vector.extract_strided_slice %27 {offsets = [100, 0], sizes = [2, 128], strides = [1, 1]} : vector<128x128xf32> to vector<2x128xf32>
    %141 = vector.extract_strided_slice %27 {offsets = [102, 0], sizes = [2, 128], strides = [1, 1]} : vector<128x128xf32> to vector<2x128xf32>
    %142 = vector.extract_strided_slice %27 {offsets = [112, 0], sizes = [2, 128], strides = [1, 1]} : vector<128x128xf32> to vector<2x128xf32>
    %143 = vector.extract_strided_slice %27 {offsets = [114, 0], sizes = [2, 128], strides = [1, 1]} : vector<128x128xf32> to vector<2x128xf32>
    %144 = vector.extract_strided_slice %27 {offsets = [116, 0], sizes = [2, 128], strides = [1, 1]} : vector<128x128xf32> to vector<2x128xf32>
    %145 = vector.extract_strided_slice %27 {offsets = [118, 0], sizes = [2, 128], strides = [1, 1]} : vector<128x128xf32> to vector<2x128xf32>
    %146 = tpu.concatenate %130, %131, %132, %133, %134, %135, %136, %137, %138, %139, %140, %141, %142, %143, %144, %145 in 1 : vector<2x128xf32>, vector<2x128xf32>, vector<2x128xf32>, vector<2x128xf32>, vector<2x128xf32>, vector<2x128xf32>, vector<2x128xf32>, vector<2x128xf32>, vector<2x128xf32>, vector<2x128xf32>, vector<2x128xf32>, vector<2x128xf32>, vector<2x128xf32>, vector<2x128xf32>, vector<2x128xf32>, vector<2x128xf32> -> vector<2x2048xf32>
    %147 = vector.extract_strided_slice %27 {offsets = [68, 0], sizes = [2, 128], strides = [1, 1]} : vector<128x128xf32> to vector<2x128xf32>
    %148 = vector.extract_strided_slice %27 {offsets = [70, 0], sizes = [2, 128], strides = [1, 1]} : vector<128x128xf32> to vector<2x128xf32>
    %149 = vector.extract_strided_slice %27 {offsets = [72, 0], sizes = [2, 128], strides = [1, 1]} : vector<128x128xf32> to vector<2x128xf32>
    %150 = vector.extract_strided_slice %27 {offsets = [74, 0], sizes = [2, 128], strides = [1, 1]} : vector<128x128xf32> to vector<2x128xf32>
    %151 = vector.extract_strided_slice %27 {offsets = [84, 0], sizes = [2, 128], strides = [1, 1]} : vector<128x128xf32> to vector<2x128xf32>
    %152 = vector.extract_strided_slice %27 {offsets = [86, 0], sizes = [2, 128], strides = [1, 1]} : vector<128x128xf32> to vector<2x128xf32>
    %153 = vector.extract_strided_slice %27 {offsets = [88, 0], sizes = [2, 128], strides = [1, 1]} : vector<128x128xf32> to vector<2x128xf32>
    %154 = vector.extract_strided_slice %27 {offsets = [90, 0], sizes = [2, 128], strides = [1, 1]} : vector<128x128xf32> to vector<2x128xf32>
    %155 = vector.extract_strided_slice %27 {offsets = [100, 0], sizes = [2, 128], strides = [1, 1]} : vector<128x128xf32> to vector<2x128xf32>
    %156 = vector.extract_strided_slice %27 {offsets = [102, 0], sizes = [2, 128], strides = [1, 1]} : vector<128x128xf32> to vector<2x128xf32>
    %157 = vector.extract_strided_slice %27 {offsets = [104, 0], sizes = [2, 128], strides = [1, 1]} : vector<128x128xf32> to vector<2x128xf32>
    %158 = vector.extract_strided_slice %27 {offsets = [106, 0], sizes = [2, 128], strides = [1, 1]} : vector<128x128xf32> to vector<2x128xf32>
    %159 = vector.extract_strided_slice %27 {offsets = [116, 0], sizes = [2, 128], strides = [1, 1]} : vector<128x128xf32> to vector<2x128xf32>
    %160 = vector.extract_strided_slice %27 {offsets = [118, 0], sizes = [2, 128], strides = [1, 1]} : vector<128x128xf32> to vector<2x128xf32>
    %161 = vector.extract_strided_slice %27 {offsets = [120, 0], sizes = [2, 128], strides = [1, 1]} : vector<128x128xf32> to vector<2x128xf32>
    %162 = vector.extract_strided_slice %27 {offsets = [122, 0], sizes = [2, 128], strides = [1, 1]} : vector<128x128xf32> to vector<2x128xf32>
    %163 = tpu.concatenate %147, %148, %149, %150, %151, %152, %153, %154, %155, %156, %157, %158, %159, %160, %161, %162 in 1 : vector<2x128xf32>, vector<2x128xf32>, vector<2x128xf32>, vector<2x128xf32>, vector<2x128xf32>, vector<2x128xf32>, vector<2x128xf32>, vector<2x128xf32>, vector<2x128xf32>, vector<2x128xf32>, vector<2x128xf32>, vector<2x128xf32>, vector<2x128xf32>, vector<2x128xf32>, vector<2x128xf32>, vector<2x128xf32> -> vector<2x2048xf32>
    %164 = vector.extract_strided_slice %27 {offsets = [72, 0], sizes = [2, 128], strides = [1, 1]} : vector<128x128xf32> to vector<2x128xf32>
    %165 = vector.extract_strided_slice %27 {offsets = [74, 0], sizes = [2, 128], strides = [1, 1]} : vector<128x128xf32> to vector<2x128xf32>
    %166 = vector.extract_strided_slice %27 {offsets = [76, 0], sizes = [2, 128], strides = [1, 1]} : vector<128x128xf32> to vector<2x128xf32>
    %167 = vector.extract_strided_slice %27 {offsets = [78, 0], sizes = [2, 128], strides = [1, 1]} : vector<128x128xf32> to vector<2x128xf32>
    %168 = vector.extract_strided_slice %27 {offsets = [88, 0], sizes = [2, 128], strides = [1, 1]} : vector<128x128xf32> to vector<2x128xf32>
    %169 = vector.extract_strided_slice %27 {offsets = [90, 0], sizes = [2, 128], strides = [1, 1]} : vector<128x128xf32> to vector<2x128xf32>
    %170 = vector.extract_strided_slice %27 {offsets = [92, 0], sizes = [2, 128], strides = [1, 1]} : vector<128x128xf32> to vector<2x128xf32>
    %171 = vector.extract_strided_slice %27 {offsets = [94, 0], sizes = [2, 128], strides = [1, 1]} : vector<128x128xf32> to vector<2x128xf32>
    %172 = vector.extract_strided_slice %27 {offsets = [104, 0], sizes = [2, 128], strides = [1, 1]} : vector<128x128xf32> to vector<2x128xf32>
    %173 = vector.extract_strided_slice %27 {offsets = [106, 0], sizes = [2, 128], strides = [1, 1]} : vector<128x128xf32> to vector<2x128xf32>
    %174 = vector.extract_strided_slice %27 {offsets = [108, 0], sizes = [2, 128], strides = [1, 1]} : vector<128x128xf32> to vector<2x128xf32>
    %175 = vector.extract_strided_slice %27 {offsets = [110, 0], sizes = [2, 128], strides = [1, 1]} : vector<128x128xf32> to vector<2x128xf32>
    %176 = vector.extract_strided_slice %27 {offsets = [120, 0], sizes = [2, 128], strides = [1, 1]} : vector<128x128xf32> to vector<2x128xf32>
    %177 = vector.extract_strided_slice %27 {offsets = [122, 0], sizes = [2, 128], strides = [1, 1]} : vector<128x128xf32> to vector<2x128xf32>
    %178 = vector.extract_strided_slice %27 {offsets = [124, 0], sizes = [2, 128], strides = [1, 1]} : vector<128x128xf32> to vector<2x128xf32>
    %179 = vector.extract_strided_slice %27 {offsets = [126, 0], sizes = [2, 128], strides = [1, 1]} : vector<128x128xf32> to vector<2x128xf32>
    %180 = tpu.concatenate %164, %165, %166, %167, %168, %169, %170, %171, %172, %173, %174, %175, %176, %177, %178, %179 in 1 : vector<2x128xf32>, vector<2x128xf32>, vector<2x128xf32>, vector<2x128xf32>, vector<2x128xf32>, vector<2x128xf32>, vector<2x128xf32>, vector<2x128xf32>, vector<2x128xf32>, vector<2x128xf32>, vector<2x128xf32>, vector<2x128xf32>, vector<2x128xf32>, vector<2x128xf32>, vector<2x128xf32>, vector<2x128xf32> -> vector<2x2048xf32>
    %181 = tpu.concatenate %44, %61, %78, %95, %112, %129, %146, %163, %180 in 0 : vector<2x2048xf32>, vector<2x2048xf32>, vector<2x2048xf32>, vector<2x2048xf32>, vector<2x2048xf32>, vector<2x2048xf32>, vector<2x2048xf32>, vector<2x2048xf32>, vector<2x2048xf32> -> vector<18x2048xf32>
    %c0_13 = arith.constant 0 : index
    %c0_14 = arith.constant 0 : index
    %182 = vector.load %arg4[%c0_13, %c0_14] : memref<2048x128xf32, #tpu.memory_space<vmem>>, vector<2048x128xf32>
    %cst_15 = arith.constant dense<0.000000e+00> : vector<18x128xf32>
    %183 = tpu.matmul %181, %182, %cst_15 {dimension_numbers = #tpu.dot_dimension_numbers<[1], [0], [0], [1], [0, 0, 1, 1], [], []>} : vector<18x2048xf32>, vector<2048x128xf32>, vector<18x128xf32> -> vector<18x128xf32>
    %cst_16 = arith.constant dense<0.000000e+00> : vector<128xf32>
    %184 = vector.multi_reduction <add>, %183, %cst_16 [0] : vector<18x128xf32> to vector<128xf32>
    %185 = vector.shape_cast %184 : vector<128xf32> to vector<1x128xf32>
    %cst_17 = arith.constant 0.055555556 : f32
    %186 = vector.broadcast %cst_17 : f32 to vector<1x128xf32>
    %187 = arith.mulf %185, %186 : vector<1x128xf32>
    %188 = arith.mulf %183, %183 : vector<18x128xf32>
    %cst_18 = arith.constant dense<0.000000e+00> : vector<128xf32>
    %189 = vector.multi_reduction <add>, %188, %cst_18 [0] : vector<18x128xf32> to vector<128xf32>
    %190 = vector.shape_cast %189 : vector<128xf32> to vector<1x128xf32>
    %cst_19 = arith.constant 0.055555556 : f32
    %191 = vector.broadcast %cst_19 : f32 to vector<1x128xf32>
    %192 = arith.mulf %190, %191 : vector<1x128xf32>
    %193 = arith.mulf %187, %187 : vector<1x128xf32>
    %194 = arith.subf %192, %193 : vector<1x128xf32>
    %c0_20 = arith.constant 0 : index
    %c0_21 = arith.constant 0 : index
    %195 = vector.load %arg5[%c0_20, %c0_21] : memref<1x128xf32, #tpu.memory_space<vmem>>, vector<1x128xf32>
    %cst_22 = arith.constant 9.99999974E-6 : f32
    %196 = vector.broadcast %cst_22 : f32 to vector<1x128xf32>
    %197 = arith.addf %194, %196 : vector<1x128xf32>
    %198 = math.rsqrt %197 : vector<1x128xf32>
    %199 = arith.mulf %195, %198 : vector<1x128xf32>
    %c0_23 = arith.constant 0 : index
    %c0_24 = arith.constant 0 : index
    %200 = vector.load %arg6[%c0_23, %c0_24] : memref<1x128xf32, #tpu.memory_space<vmem>>, vector<1x128xf32>
    %201 = arith.mulf %187, %199 : vector<1x128xf32>
    %202 = arith.subf %200, %201 : vector<1x128xf32>
    %203 = vector.broadcast %199 : vector<1x128xf32> to vector<18x128xf32>
    %204 = arith.mulf %183, %203 : vector<18x128xf32>
    %205 = vector.broadcast %202 : vector<1x128xf32> to vector<18x128xf32>
    %206 = arith.addf %204, %205 : vector<18x128xf32>
    %cst_25 = arith.constant 0.000000e+00 : f32
    %207 = vector.broadcast %cst_25 : f32 to vector<18x128xf32>
    %208 = arith.maximumf %206, %207 : vector<18x128xf32>
    %209 = vector.extract_strided_slice %208 {offsets = [0, 0], sizes = [2, 128], strides = [1, 1]} : vector<18x128xf32> to vector<2x128xf32>
    %210 = vector.extract_strided_slice %208 {offsets = [2, 0], sizes = [2, 128], strides = [1, 1]} : vector<18x128xf32> to vector<2x128xf32>
    %211 = vector.extract_strided_slice %208 {offsets = [4, 0], sizes = [2, 128], strides = [1, 1]} : vector<18x128xf32> to vector<2x128xf32>
    %212 = vector.extract_strided_slice %208 {offsets = [6, 0], sizes = [2, 128], strides = [1, 1]} : vector<18x128xf32> to vector<2x128xf32>
    %213 = vector.extract_strided_slice %208 {offsets = [8, 0], sizes = [2, 128], strides = [1, 1]} : vector<18x128xf32> to vector<2x128xf32>
    %214 = vector.extract_strided_slice %208 {offsets = [10, 0], sizes = [2, 128], strides = [1, 1]} : vector<18x128xf32> to vector<2x128xf32>
    %215 = vector.extract_strided_slice %208 {offsets = [12, 0], sizes = [2, 128], strides = [1, 1]} : vector<18x128xf32> to vector<2x128xf32>
    %216 = vector.extract_strided_slice %208 {offsets = [14, 0], sizes = [2, 128], strides = [1, 1]} : vector<18x128xf32> to vector<2x128xf32>
    %217 = vector.extract_strided_slice %208 {offsets = [16, 0], sizes = [2, 128], strides = [1, 1]} : vector<18x128xf32> to vector<2x128xf32>
    %218 = tpu.concatenate %209, %210, %211, %212, %213, %214, %215, %216, %217 in 1 : vector<2x128xf32>, vector<2x128xf32>, vector<2x128xf32>, vector<2x128xf32>, vector<2x128xf32>, vector<2x128xf32>, vector<2x128xf32>, vector<2x128xf32>, vector<2x128xf32> -> vector<2x1152xf32>
    %c0_26 = arith.constant 0 : index
    %c0_27 = arith.constant 0 : index
    %219 = vector.load %arg7[%c0_26, %c0_27] : memref<1152x128xf32, #tpu.memory_space<vmem>>, vector<1152x128xf32>
    %cst_28 = arith.constant dense<0.000000e+00> : vector<2x128xf32>
    %220 = tpu.matmul %218, %219, %cst_28 {dimension_numbers = #tpu.dot_dimension_numbers<[1], [0], [0], [1], [0, 0, 1, 1], [], []>} : vector<2x1152xf32>, vector<1152x128xf32>, vector<2x128xf32> -> vector<2x128xf32>
    %cst_29 = arith.constant dense<0.000000e+00> : vector<128xf32>
    %221 = vector.multi_reduction <add>, %220, %cst_29 [0] : vector<2x128xf32> to vector<128xf32>
    %222 = vector.shape_cast %221 : vector<128xf32> to vector<1x128xf32>
    %cst_30 = arith.constant 5.000000e-01 : f32
    %223 = vector.broadcast %cst_30 : f32 to vector<1x128xf32>
    %224 = arith.mulf %222, %223 : vector<1x128xf32>
    %225 = arith.mulf %220, %220 : vector<2x128xf32>
    %cst_31 = arith.constant dense<0.000000e+00> : vector<128xf32>
    %226 = vector.multi_reduction <add>, %225, %cst_31 [0] : vector<2x128xf32> to vector<128xf32>
    %227 = vector.shape_cast %226 : vector<128xf32> to vector<1x128xf32>
    %cst_32 = arith.constant 5.000000e-01 : f32
    %228 = vector.broadcast %cst_32 : f32 to vector<1x128xf32>
    %229 = arith.mulf %227, %228 : vector<1x128xf32>
    %230 = arith.mulf %224, %224 : vector<1x128xf32>
    %231 = arith.subf %229, %230 : vector<1x128xf32>
    %c0_33 = arith.constant 0 : index
    %c0_34 = arith.constant 0 : index
    %232 = vector.load %arg8[%c0_33, %c0_34] : memref<1x128xf32, #tpu.memory_space<vmem>>, vector<1x128xf32>
    %cst_35 = arith.constant 9.99999974E-6 : f32
    %233 = vector.broadcast %cst_35 : f32 to vector<1x128xf32>
    %234 = arith.addf %231, %233 : vector<1x128xf32>
    %235 = math.rsqrt %234 : vector<1x128xf32>
    %236 = arith.mulf %232, %235 : vector<1x128xf32>
    %c0_36 = arith.constant 0 : index
    %c0_37 = arith.constant 0 : index
    %237 = vector.load %arg9[%c0_36, %c0_37] : memref<1x128xf32, #tpu.memory_space<vmem>>, vector<1x128xf32>
    %238 = arith.mulf %224, %236 : vector<1x128xf32>
    %239 = arith.subf %237, %238 : vector<1x128xf32>
    %240 = vector.broadcast %236 : vector<1x128xf32> to vector<2x128xf32>
    %241 = arith.mulf %220, %240 : vector<2x128xf32>
    %242 = vector.broadcast %239 : vector<1x128xf32> to vector<2x128xf32>
    %243 = arith.addf %241, %242 : vector<2x128xf32>
    %cst_38 = arith.constant 0.000000e+00 : f32
    %244 = vector.broadcast %cst_38 : f32 to vector<2x128xf32>
    %245 = arith.maximumf %243, %244 : vector<2x128xf32>
    %c0_39 = arith.constant 0 : index
    %c0_40 = arith.constant 0 : index
    %246 = vector.load %arg10[%c0_39, %c0_40] : memref<128x128xf32, #tpu.memory_space<vmem>>, vector<128x128xf32>
    %cst_41 = arith.constant dense<0.000000e+00> : vector<2x128xf32>
    %247 = tpu.matmul %245, %246, %cst_41 {dimension_numbers = #tpu.dot_dimension_numbers<[1], [0], [0], [1], [0, 0, 1, 1], [], []>} : vector<2x128xf32>, vector<128x128xf32>, vector<2x128xf32> -> vector<2x128xf32>
    %c0_42 = arith.constant 0 : index
    %c0_43 = arith.constant 0 : index
    %248 = vector.load %arg11[%c0_42, %c0_43] : memref<1x128xf32, #tpu.memory_space<vmem>>, vector<1x128xf32>
    %249 = vector.broadcast %248 : vector<1x128xf32> to vector<2x128xf32>
    %250 = arith.addf %247, %249 : vector<2x128xf32>
    %c0_44 = arith.constant 0 : index
    %c0_45 = arith.constant 0 : index
    %251 = vector.load %arg12[%c0_44, %c0_45] : memref<2x128xf32, #tpu.memory_space<vmem>>, vector<2x128xf32>
    tpu.vector_store %arg12[%c0_44, %c0_45], %250 {strides = array<i32>} : memref<2x128xf32, #tpu.memory_space<vmem>>, vector<2x128xf32>,
    return
  }
}

</mosaic_0001>

<llo_original>
// kernel: basic_cnn_forward.1
$region0: #{basic_cnn_forward.1}
  #allocation0 [shape = 'u32[]', space=smem, size = 0x4, offset = 0x4, fixed_abs, tag = 'smem constant byte address 0x4 - core index']
  #allocation1 [shape = 'u32[144,128]{1,0:T(1,128)}', space=vmem, size = 0x12000, scoped, tag = 'internal scratch']
  %s0 = inlined_call_operand.vmem [shape: f32[128,256], index: 0, kind: input, shape index: {}]
  %s1 = inlined_call_operand.vmem [shape: f32[256,128], index: 1, kind: input, shape index: {}]
  %s2 = inlined_call_operand.vmem [shape: f32[1,128], index: 2, kind: input, shape index: {}]
  %s3 = inlined_call_operand.vmem [shape: f32[1,128], index: 3, kind: input, shape index: {}]
  %s4 = inlined_call_operand.vmem [shape: f32[2048,128], index: 4, kind: input, shape index: {}]
  %s5 = inlined_call_operand.vmem [shape: f32[1,128], index: 5, kind: input, shape index: {}]
  %s6 = inlined_call_operand.vmem [shape: f32[1,128], index: 6, kind: input, shape index: {}]
  %s7 = inlined_call_operand.vmem [shape: f32[1152,128], index: 7, kind: input, shape index: {}]
  %s8 = inlined_call_operand.vmem [shape: f32[1,128], index: 8, kind: input, shape index: {}]
  %s9 = inlined_call_operand.vmem [shape: f32[1,128], index: 9, kind: input, shape index: {}]
  %s10 = inlined_call_operand.vmem [shape: f32[128,128], index: 10, kind: input, shape index: {}]
  %s11 = inlined_call_operand.vmem [shape: f32[1,128], index: 11, kind: input, shape index: {}]
  %s12 = inlined_call_operand.hbm [shape: f32[2,128], index: 12, kind: output, shape index: {}]
  %s13 = sld [smem:[#allocation0]]
  $region58: #{basic_cnn_forward.1} parent=0
    _
  %s15 = ssub.s32 1, %s13
  %s16 = scalar_select 0, %s15, %s13
  $region1: #{basic_cnn_forward.1} parent=0
    #allocation2 [shape = 'u8[1024]{0}', space=vmem, size = 0x400, scoped, tag = 'output window, operand 0, single buffered']
    #allocation3 [shape = 's32[1]{0}', space=sflag, size = 0x4, scoped, tag = 'scoped memory for basic_cnn_forward.1']
    %17 = vsyncpa [#allocation3], 0
    // Predicated region
    $region2: #{basic_cnn_forward.1} parent=1 // pred_check
      _
    $region3: #{basic_cnn_forward.1} parent=1 // pred_check_branch
      %19 = sbr.rel (0) target = $region5
    $region4: #{basic_cnn_forward.1} parent=1 // pred_region
      _
    $region5: #{basic_cnn_forward.1} parent=1 // pred_fallthru
      _
    // Predicated region
    $region6: #{basic_cnn_forward.1} parent=1 // pred_check
      _
    $region7: #{basic_cnn_forward.1} parent=1 // pred_check_branch
      %21 = sbr.rel (0) target = $region9
    $region8: #{basic_cnn_forward.1} parent=1 // pred_region
      _
    $region9: #{basic_cnn_forward.1} parent=1 // pred_fallthru
      _
    // Predicated region
    $region10: #{basic_cnn_forward.1} parent=1 // pred_check
      _
    $region11: #{basic_cnn_forward.1} parent=1 // pred_check_branch
      %23 = sbr.rel (0) target = $region13
    $region12: #{basic_cnn_forward.1} parent=1 // pred_region
      _
    $region13: #{basic_cnn_forward.1} parent=1 // pred_fallthru
      _
    // Predicated region
    $region14: #{basic_cnn_forward.1} parent=1 // pred_check
      _
    $region15: #{basic_cnn_forward.1} parent=1 // pred_check_branch
      %25 = sbr.rel (0) target = $region17
    $region16: #{basic_cnn_forward.1} parent=1 // pred_region
      _
    $region17: #{basic_cnn_forward.1} parent=1 // pred_fallthru
      _
    // Predicated region
    $region18: #{basic_cnn_forward.1} parent=1 // pred_check
      _
    $region19: #{basic_cnn_forward.1} parent=1 // pred_check_branch
      %27 = sbr.rel (0) target = $region21
    $region20: #{basic_cnn_forward.1} parent=1 // pred_region
      _
    $region21: #{basic_cnn_forward.1} parent=1 // pred_fallthru
      _
    // Predicated region
    $region22: #{basic_cnn_forward.1} parent=1 // pred_check
      _
    $region23: #{basic_cnn_forward.1} parent=1 // pred_check_branch
      %29 = sbr.rel (0) target = $region25
    $region24: #{basic_cnn_forward.1} parent=1 // pred_region
      _
    $region25: #{basic_cnn_forward.1} parent=1 // pred_fallthru
      _
    // Predicated region
    $region26: #{basic_cnn_forward.1} parent=1 // pred_check
      _
    $region27: #{basic_cnn_forward.1} parent=1 // pred_check_branch
      %31 = sbr.rel (0) target = $region29
    $region28: #{basic_cnn_forward.1} parent=1 // pred_region
      _
    $region29: #{basic_cnn_forward.1} parent=1 // pred_fallthru
      _
    // Predicated region
    $region30: #{basic_cnn_forward.1} parent=1 // pred_check
      _
    $region31: #{basic_cnn_forward.1} parent=1 // pred_check_branch
      %33 = sbr.rel (0) target = $region33
    $region32: #{basic_cnn_forward.1} parent=1 // pred_region
      _
    $region33: #{basic_cnn_forward.1} parent=1 // pred_fallthru
      _
    // Predicated region
    $region34: #{basic_cnn_forward.1} parent=1 // pred_check
      _
    $region35: #{basic_cnn_forward.1} parent=1 // pred_check_branch
      %35 = sbr.rel (0) target = $region37
    $region36: #{basic_cnn_forward.1} parent=1 // pred_region
      _
    $region37: #{basic_cnn_forward.1} parent=1 // pred_fallthru
      _
    // Predicated region
    $region38: #{basic_cnn_forward.1} parent=1 // pred_check
      _
    $region39: #{basic_cnn_forward.1} parent=1 // pred_check_branch
      %37 = sbr.rel (0) target = $region41
    $region40: #{basic_cnn_forward.1} parent=1 // pred_region
      _
    $region41: #{basic_cnn_forward.1} parent=1 // pred_fallthru
      _
    // Predicated region
    $region42: #{basic_cnn_forward.1} parent=1 // pred_check
      _
    $region43: #{basic_cnn_forward.1} parent=1 // pred_check_branch
      %39 = sbr.rel (0) target = $region45
    $region44: #{basic_cnn_forward.1} parent=1 // pred_region
      _
    $region45: #{basic_cnn_forward.1} parent=1 // pred_fallthru
      _
    // Predicated region
    $region46: #{basic_cnn_forward.1} parent=1 // pred_check
      _
    $region47: #{basic_cnn_forward.1} parent=1 // pred_check_branch
      %41 = sbr.rel (0) target = $region49
    $region48: #{basic_cnn_forward.1} parent=1 // pred_region
      _
    $region49: #{basic_cnn_forward.1} parent=1 // pred_fallthru
      _
    %v42 = vld [vmem:[%s0] sm:$0xff]
    %v43 = vld [vmem:[%s0 + $0x8] sm:$0xff]
    %v44 = vld [vmem:[%s0 + $0x10] sm:$0xff]
    %v45 = vld [vmem:[%s0 + $0x18] sm:$0xff]
    %v46 = vld [vmem:[%s0 + $0x20] sm:$0xff]
    %v47 = vld [vmem:[%s0 + $0x28] sm:$0xff]
    %v48 = vld [vmem:[%s0 + $0x30] sm:$0xff]
    %v49 = vld [vmem:[%s0 + $0x38] sm:$0xff]
    %v50 = vld [vmem:[%s0 + $0x40] sm:$0xff]
    %v51 = vld [vmem:[%s0 + $0x48] sm:$0xff]
    %v52 = vld [vmem:[%s0 + $0x50] sm:$0xff]
    %v53 = vld [vmem:[%s0 + $0x58] sm:$0xff]
    %v54 = vld [vmem:[%s0 + $0x60] sm:$0xff]
    %v55 = vld [vmem:[%s0 + $0x68] sm:$0xff]
    %v56 = vld [vmem:[%s0 + $0x70] sm:$0xff]
    %v57 = vld [vmem:[%s0 + $0x78] sm:$0xff]
    %v58 = vld [vmem:[%s0 + $0x80] sm:$0xff]
    %v59 = vld [vmem:[%s0 + $0x88] sm:$0xff]
    %v60 = vld [vmem:[%s0 + $0x90] sm:$0xff]
    %v61 = vld [vmem:[%s0 + $0x98] sm:$0xff]
    %v62 = vld [vmem:[%s0 + $0xa0] sm:$0xff]
    %v63 = vld [vmem:[%s0 + $0xa8] sm:$0xff]
    %v64 = vld [vmem:[%s0 + $0xb0] sm:$0xff]
    %v65 = vld [vmem:[%s0 + $0xb8] sm:$0xff]
    %v66 = vld [vmem:[%s0 + $0xc0] sm:$0xff]
    %v67 = vld [vmem:[%s0 + $0xc8] sm:$0xff]
    %v68 = vld [vmem:[%s0 + $0xd0] sm:$0xff]
    %v69 = vld [vmem:[%s0 + $0xd8] sm:$0xff]
    %v70 = vld [vmem:[%s0 + $0xe0] sm:$0xff]
    %v71 = vld [vmem:[%s0 + $0xe8] sm:$0xff]
    %v72 = vld [vmem:[%s0 + $0xf0] sm:$0xff]
    %v73 = vld [vmem:[%s0 + $0xf8] sm:$0xff]
    %v74 = vld [vmem:[%s1] sm:$0xff]
    %v75 = vld [vmem:[%s1 + $0x8] sm:$0xff]
    %v76 = vld [vmem:[%s1 + $0x10] sm:$0xff]
    %v77 = vld [vmem:[%s1 + $0x18] sm:$0xff]
    %v78 = vld [vmem:[%s1 + $0x20] sm:$0xff]
    %v79 = vld [vmem:[%s1 + $0x28] sm:$0xff]
    %v80 = vld [vmem:[%s1 + $0x30] sm:$0xff]
    %v81 = vld [vmem:[%s1 + $0x38] sm:$0xff]
    %v82 = vld [vmem:[%s1 + $0x40] sm:$0xff]
    %v83 = vld [vmem:[%s1 + $0x48] sm:$0xff]
    %v84 = vld [vmem:[%s1 + $0x50] sm:$0xff]
    %v85 = vld [vmem:[%s1 + $0x58] sm:$0xff]
    %v86 = vld [vmem:[%s1 + $0x60] sm:$0xff]
    %v87 = vld [vmem:[%s1 + $0x68] sm:$0xff]
    %v88 = vld [vmem:[%s1 + $0x70] sm:$0xff]
    %v89 = vld [vmem:[%s1 + $0x78] sm:$0xff]
    %v90 = vld [vmem:[%s1 + $0x80] sm:$0xff]
    %v91 = vld [vmem:[%s1 + $0x88] sm:$0xff]
    %v92 = vld [vmem:[%s1 + $0x90] sm:$0xff]
    %v93 = vld [vmem:[%s1 + $0x98] sm:$0xff]
    %v94 = vld [vmem:[%s1 + $0xa0] sm:$0xff]
    %v95 = vld [vmem:[%s1 + $0xa8] sm:$0xff]
    %v96 = vld [vmem:[%s1 + $0xb0] sm:$0xff]
    %v97 = vld [vmem:[%s1 + $0xb8] sm:$0xff]
    %v98 = vld [vmem:[%s1 + $0xc0] sm:$0xff]
    %v99 = vld [vmem:[%s1 + $0xc8] sm:$0xff]
    %v100 = vld [vmem:[%s1 + $0xd0] sm:$0xff]
    %v101 = vld [vmem:[%s1 + $0xd8] sm:$0xff]
    %v102 = vld [vmem:[%s1 + $0xe0] sm:$0xff]
    %v103 = vld [vmem:[%s1 + $0xe8] sm:$0xff]
    %v104 = vld [vmem:[%s1 + $0xf0] sm:$0xff]
    %v105 = vld [vmem:[%s1 + $0xf8] sm:$0xff]
    %106 = vmatprep.subr.mxu0 0.0
    %107 = vmatpush1.msra.mxu0 %v74
    %108 = vmatprep.subr.mxu0 0.0
    %109 = vmatpush1.msra.mxu0 %v75
    %110 = vmatprep.subr.mxu0 0.0
    %111 = vmatpush1.msra.mxu0 %v76
    %112 = vmatprep.subr.mxu0 0.0
    %113 = vmatpush1.msra.mxu0 %v77
    %114 = vmatprep.subr.mxu0 0.0
    %115 = vmatpush1.msra.mxu0 %v78
    %116 = vmatprep.subr.mxu0 0.0
    %117 = vmatpush1.msra.mxu0 %v79
    %118 = vmatprep.subr.mxu0 0.0
    %119 = vmatpush1.msra.mxu0 %v80
    %120 = vmatprep.subr.mxu0 0.0
    %121 = vmatpush1.msra.mxu0 %v81
    %122 = vmatprep.subr.mxu0 0.0
    %123 = vmatpush1.msra.mxu0 %v82
    %124 = vmatprep.subr.mxu0 0.0
    %125 = vmatpush1.msra.mxu0 %v83
    %126 = vmatprep.subr.mxu0 0.0
    %127 = vmatpush1.msra.mxu0 %v84
    %128 = vmatprep.subr.mxu0 0.0
    %129 = vmatpush1.msra.mxu0 %v85
    %130 = vmatprep.subr.mxu0 0.0
    %131 = vmatpush1.msra.mxu0 %v86
    %132 = vmatprep.subr.mxu0 0.0
    %133 = vmatpush1.msra.mxu0 %v87
    %134 = vmatprep.subr.mxu0 0.0
    %135 = vmatpush1.msra.mxu0 %v88
    %136 = vmatprep.subr.mxu0 0.0
    %137 = vmatpush1.msra.mxu0 %v89
    %138 = vmatprep.subr.mxu0 0.0
    %139 = vmatpush1.msra.mxu0 %v90
    %140 = vmatprep.subr.mxu0 0.0
    %141 = vmatpush1.msra.mxu0 %v91
    %142 = vmatprep.subr.mxu0 0.0
    %143 = vmatpush1.msra.mxu0 %v92
    %144 = vmatprep.subr.mxu0 0.0
    %145 = vmatpush1.msra.mxu0 %v93
    %146 = vmatprep.subr.mxu0 0.0
    %147 = vmatpush1.msra.mxu0 %v94
    %148 = vmatprep.subr.mxu0 0.0
    %149 = vmatpush1.msra.mxu0 %v95
    %150 = vmatprep.subr.mxu0 0.0
    %151 = vmatpush1.msra.mxu0 %v96
    %152 = vmatprep.subr.mxu0 0.0
    %153 = vmatpush1.msra.mxu0 %v97
    %154 = vmatprep.subr.mxu0 0.0
    %155 = vmatpush1.msra.mxu0 %v98
    %156 = vmatprep.subr.mxu0 0.0
    %157 = vmatpush1.msra.mxu0 %v99
    %158 = vmatprep.subr.mxu0 0.0
    %159 = vmatpush1.msra.mxu0 %v100
    %160 = vmatprep.subr.mxu0 0.0
    %161 = vmatpush1.msra.mxu0 %v101
    %162 = vmatprep.subr.mxu0 0.0
    %163 = vmatpush1.msra.mxu0 %v102
    %164 = vmatprep.subr.mxu0 0.0
    %165 = vmatpush1.msra.mxu0 %v103
    %166 = vmatprep.subr.mxu0 0.0
    %167 = vmatpush1.msra.mxu0 %v104
    %168 = vmatprep.subr.mxu0 0.0
    %169 = vmatpush1.msra.mxu0 %v105
    %170 = vmatprep.mubr.f32.mxu0 %v43
    %171 = vmatmul.mubr.f32.gmra.mrb[0].mxu0 %v42
    %v172 = vpop.f32.mrb[0].mxu0
    %v173 = vadd.f32 0.0, %v172
    %v174 = vpop.f32.mrb[0].mxu0
    %175 = vmatprep.mubr.f32.mxu0 %v45
    %176 = vmatmul.mubr.f32.gmra.mrb[0].mxu0 %v44
    %v177 = vpop.f32.mrb[0].mxu0
    %v178 = vadd.f32 0.0, %v177
    %v179 = vpop.f32.mrb[0].mxu0
    %180 = vmatprep.mubr.f32.mxu0 %v47
    %181 = vmatmul.mubr.f32.gmra.mrb[0].mxu0 %v46
    %v182 = vpop.f32.mrb[0].mxu0
    %v183 = vadd.f32 0.0, %v182
    %v184 = vpop.f32.mrb[0].mxu0
    %185 = vmatprep.mubr.f32.mxu0 %v49
    %186 = vmatmul.mubr.f32.gmra.mrb[0].mxu0 %v48
    %v187 = vpop.f32.mrb[0].mxu0
    %v188 = vadd.f32 0.0, %v187
    %v189 = vpop.f32.mrb[0].mxu0
    %190 = vmatprep.mubr.f32.mxu0 %v51
    %191 = vmatmul.mubr.f32.gmra.mrb[0].mxu0 %v50
    %v192 = vpop.f32.mrb[0].mxu0
    %v193 = vadd.f32 0.0, %v192
    %v194 = vpop.f32.mrb[0].mxu0
    %195 = vmatprep.mubr.f32.mxu0 %v53
    %196 = vmatmul.mubr.f32.gmra.mrb[0].mxu0 %v52
    %v197 = vpop.f32.mrb[0].mxu0
    %v198 = vadd.f32 0.0, %v197
    %v199 = vpop.f32.mrb[0].mxu0
    %200 = vmatprep.mubr.f32.mxu0 %v55
    %201 = vmatmul.mubr.f32.gmra.mrb[0].mxu0 %v54
    %v202 = vpop.f32.mrb[0].mxu0
    %v203 = vadd.f32 0.0, %v202
    %v204 = vpop.f32.mrb[0].mxu0
    %205 = vmatprep.mubr.f32.mxu0 %v57
    %206 = vmatmul.mubr.f32.gmra.mrb[0].mxu0 %v56
    %v207 = vpop.f32.mrb[0].mxu0
    %v208 = vadd.f32 0.0, %v207
    %v209 = vpop.f32.mrb[0].mxu0
    %210 = vmatprep.mubr.f32.mxu0 %v59
    %211 = vmatmul.mubr.f32.gmra.mrb[0].mxu0 %v58
    %v212 = vpop.f32.mrb[0].mxu0
    %v213 = vadd.f32 0.0, %v212
    %v214 = vpop.f32.mrb[0].mxu0
    %215 = vmatprep.mubr.f32.mxu0 %v61
    %216 = vmatmul.mubr.f32.gmra.mrb[0].mxu0 %v60
    %v217 = vpop.f32.mrb[0].mxu0
    %v218 = vadd.f32 0.0, %v217
    %v219 = vpop.f32.mrb[0].mxu0
    %220 = vmatprep.mubr.f32.mxu0 %v63
    %221 = vmatmul.mubr.f32.gmra.mrb[0].mxu0 %v62
    %v222 = vpop.f32.mrb[0].mxu0
    %v223 = vadd.f32 0.0, %v222
    %v224 = vpop.f32.mrb[0].mxu0
    %225 = vmatprep.mubr.f32.mxu0 %v65
    %226 = vmatmul.mubr.f32.gmra.mrb[0].mxu0 %v64
    %v227 = vpop.f32.mrb[0].mxu0
    %v228 = vadd.f32 0.0, %v227
    %v229 = vpop.f32.mrb[0].mxu0
    %230 = vmatprep.mubr.f32.mxu0 %v67
    %231 = vmatmul.mubr.f32.gmra.mrb[0].mxu0 %v66
    %v232 = vpop.f32.mrb[0].mxu0
    %v233 = vadd.f32 0.0, %v232
    %v234 = vpop.f32.mrb[0].mxu0
    %235 = vmatprep.mubr.f32.mxu0 %v69
    %236 = vmatmul.mubr.f32.gmra.mrb[0].mxu0 %v68
    %v237 = vpop.f32.mrb[0].mxu0
    %v238 = vadd.f32 0.0, %v237
    %v239 = vpop.f32.mrb[0].mxu0
    %240 = vmatprep.mubr.f32.mxu0 %v71
    %241 = vmatmul.mubr.f32.gmra.mrb[0].mxu0 %v70
    %v242 = vpop.f32.mrb[0].mxu0
    %v243 = vadd.f32 0.0, %v242
    %v244 = vpop.f32.mrb[0].mxu0
    %245 = vmatprep.mubr.f32.mxu0 %v73
    %246 = vmatmul.mubr.f32.gmra.mrb[0].mxu0 %v72
    %v247 = vpop.f32.mrb[0].mxu0
    %v248 = vadd.f32 0.0, %v247
    %v249 = vpop.f32.mrb[0].mxu0
    %250 = vdwg.mxu0
    %v251 = vadd.f32 %v173, %v178
    %v252 = vadd.f32 %v251, %v183
    %v253 = vadd.f32 %v252, %v188
    %v254 = vadd.f32 %v253, %v193
    %v255 = vadd.f32 %v254, %v198
    %v256 = vadd.f32 %v255, %v203
    %v257 = vadd.f32 %v256, %v208
    %v258 = vadd.f32 %v257, %v213
    %v259 = vadd.f32 %v258, %v218
    %v260 = vadd.f32 %v259, %v223
    %v261 = vadd.f32 %v260, %v228
    %v262 = vadd.f32 %v261, %v233
    %v263 = vadd.f32 %v262, %v238
    %v264 = vadd.f32 %v263, %v243
    %v265 = vadd.f32 %v264, %v248
    %v266 = vrot.slane %v265, 4
    %v267 = vadd.f32 %v265, %v266
    %v268 = vrot.slane %v267, 2
    %v269 = vadd.f32 %v267, %v268
    %v270 = vrot.slane %v269, 1
    %v271 = vadd.f32 %v269, %v270
    %v272 = vmul.f32 %v271, 0.0078125
    %v273 = vmul.f32 %v173, %v173
    %v274 = vmul.f32 %v178, %v178
    %v275 = vmul.f32 %v183, %v183
    %v276 = vmul.f32 %v188, %v188
    %v277 = vmul.f32 %v193, %v193
    %v278 = vmul.f32 %v198, %v198
    %v279 = vmul.f32 %v203, %v203
    %v280 = vmul.f32 %v208, %v208
    %v281 = vmul.f32 %v213, %v213
    %v282 = vmul.f32 %v218, %v218
    %v283 = vmul.f32 %v223, %v223
    %v284 = vmul.f32 %v228, %v228
    %v285 = vmul.f32 %v233, %v233
    %v286 = vmul.f32 %v238, %v238
    %v287 = vmul.f32 %v243, %v243
    %v288 = vmul.f32 %v248, %v248
    %v289 = vadd.f32 %v273, %v274
    %v290 = vadd.f32 %v289, %v275
    %v291 = vadd.f32 %v290, %v276
    %v292 = vadd.f32 %v291, %v277
    %v293 = vadd.f32 %v292, %v278
    %v294 = vadd.f32 %v293, %v279
    %v295 = vadd.f32 %v294, %v280
    %v296 = vadd.f32 %v295, %v281
    %v297 = vadd.f32 %v296, %v282
    %v298 = vadd.f32 %v297, %v283
    %v299 = vadd.f32 %v298, %v284
    %v300 = vadd.f32 %v299, %v285
    %v301 = vadd.f32 %v300, %v286
    %v302 = vadd.f32 %v301, %v287
    %v303 = vadd.f32 %v302, %v288
    %v304 = vrot.slane %v303, 4
    %v305 = vadd.f32 %v303, %v304
    %v306 = vrot.slane %v305, 2
    %v307 = vadd.f32 %v305, %v306
    %v308 = vrot.slane %v307, 1
    %v309 = vadd.f32 %v307, %v308
    %v310 = vmul.f32 %v309, 0.0078125
    %v311 = vmul.f32 %v272, %v272
    %v312 = vsub.f32 %v310, %v311
    %v313 = vld [vmem:[%s2] sm:$0x1]
    %v314 = vadd.f32 %v312, 1e-05
    %v315 = vrsqrt.pop %v314
    %v316 = vmul.f32 %v313, %v315
    %v317 = vld [vmem:[%s3] sm:$0x1]
    %v318 = vmul.f32 %v272, %v316
    %v319 = vsub.f32 %v317, %v318
    %v321 = vlaneseq
    %v322 = vshrl.u32 %v321, 7
    %v323 = vsub.s32 0, %v322
    %v324 = vrot.slane %v316, %v323
    %v326 = vmul.f32 %v173, %v324
    %v327 = vmul.f32 %v178, %v324
    %v328 = vmul.f32 %v183, %v324
    %v329 = vmul.f32 %v188, %v324
    %v330 = vmul.f32 %v193, %v324
    %v331 = vmul.f32 %v198, %v324
    %v332 = vmul.f32 %v203, %v324
    %v333 = vmul.f32 %v208, %v324
    %v334 = vmul.f32 %v213, %v324
    %v335 = vmul.f32 %v218, %v324
    %v336 = vmul.f32 %v223, %v324
    %v337 = vmul.f32 %v228, %v324
    %v338 = vmul.f32 %v233, %v324
    %v339 = vmul.f32 %v238, %v324
    %v340 = vmul.f32 %v243, %v324
    %v341 = vmul.f32 %v248, %v324
    %v343 = vlaneseq
    %v344 = vshrl.u32 %v343, 7
    %v345 = vsub.s32 0, %v344
    %v346 = vrot.slane %v319, %v345
    %v348 = vadd.f32 %v326, %v346
    %v349 = vadd.f32 %v327, %v346
    %v350 = vadd.f32 %v328, %v346
    %v351 = vadd.f32 %v329, %v346
    %v352 = vadd.f32 %v330, %v346
    %v353 = vadd.f32 %v331, %v346
    %v354 = vadd.f32 %v332, %v346
    %v355 = vadd.f32 %v333, %v346
    %v356 = vadd.f32 %v334, %v346
    %v357 = vadd.f32 %v335, %v346
    %v358 = vadd.f32 %v336, %v346
    %v359 = vadd.f32 %v337, %v346
    %v360 = vadd.f32 %v338, %v346
    %v361 = vadd.f32 %v339, %v346
    %v362 = vadd.f32 %v340, %v346
    %v363 = vadd.f32 %v341, %v346
    %v364 = vmax.f32 %v348, 0.0
    %v365 = vmax.f32 %v349, 0.0
    %v366 = vmax.f32 %v350, 0.0
    %v367 = vmax.f32 %v351, 0.0
    %v368 = vmax.f32 %v352, 0.0
    %v369 = vmax.f32 %v353, 0.0
    %v370 = vmax.f32 %v354, 0.0
    %v371 = vmax.f32 %v355, 0.0
    %v372 = vmax.f32 %v356, 0.0
    %v373 = vmax.f32 %v357, 0.0
    %v374 = vmax.f32 %v358, 0.0
    %v375 = vmax.f32 %v359, 0.0
    %v376 = vmax.f32 %v360, 0.0
    %v377 = vmax.f32 %v361, 0.0
    %v378 = vmax.f32 %v362, 0.0
    %v379 = vmax.f32 %v363, 0.0
    %v381 = vrot.slane %v364, 2
    %v383 = vrot.slane %v364, 4
    %v385 = vrot.slane %v364, 6
    %v388 = vrot.slane %v366, 2
    %v390 = vrot.slane %v366, 4
    %v392 = vrot.slane %v366, 6
    %v395 = vrot.slane %v368, 2
    %v397 = vrot.slane %v368, 4
    %v399 = vrot.slane %v368, 6
    %v402 = vrot.slane %v370, 2
    %v404 = vrot.slane %v370, 4
    %v406 = vrot.slane %v370, 6
    %v409 = vrot.slane %v365, 4
    %v410 = vrot.slane %v365, 6
    %v412 = vrot.slane %v367, 4
    %v413 = vrot.slane %v367, 6
    %v415 = vrot.slane %v369, 4
    %v416 = vrot.slane %v369, 6
    %v418 = vrot.slane %v371, 4
    %v419 = vrot.slane %v371, 6
    %v420 = vrot.slane %v365, 2
    %v421 = vrot.slane %v367, 2
    %v422 = vrot.slane %v369, 2
    %v423 = vrot.slane %v371, 2
    %v425 = vrot.slane %v372, 2
    %v426 = vrot.slane %v372, 4
    %v427 = vrot.slane %v372, 6
    %v429 = vrot.slane %v374, 2
    %v430 = vrot.slane %v374, 4
    %v431 = vrot.slane %v374, 6
    %v433 = vrot.slane %v373, 4
    %v434 = vrot.slane %v373, 6
    %v436 = vrot.slane %v375, 4
    %v437 = vrot.slane %v375, 6
    %v438 = vrot.slane %v373, 2
    %v439 = vrot.slane %v375, 2
    %v441 = vrot.slane %v376, 2
    %v442 = vrot.slane %v376, 4
    %v443 = vrot.slane %v376, 6
    %v445 = vrot.slane %v378, 2
    %v446 = vrot.slane %v378, 4
    %v447 = vrot.slane %v378, 6
    %v449 = vrot.slane %v377, 4
    %v450 = vrot.slane %v377, 6
    %v452 = vrot.slane %v379, 4
    %v453 = vrot.slane %v379, 6
    %v460 = vrot.slane %v377, 2
    %v464 = vrot.slane %v379, 2
    %v468 = vrot.slane %v381, 2
    %v469 = vrot.slane %v409, 2
    %v470 = vrot.slane %v410, 2
    %v471 = vrot.slane %v388, 2
    %v472 = vrot.slane %v412, 2
    %v473 = vrot.slane %v413, 2
    %v474 = vrot.slane %v395, 2
    %v475 = vrot.slane %v415, 2
    %v476 = vrot.slane %v416, 2
    %v477 = vrot.slane %v402, 2
    %v478 = vrot.slane %v418, 2
    %v479 = vrot.slane %v419, 2
    %v492 = vrot.slane %v420, 4
    %v493 = vrot.slane %v409, 4
    %v494 = vrot.slane %v410, 4
    %v495 = vrot.slane %v421, 4
    %v496 = vrot.slane %v412, 4
    %v497 = vrot.slane %v413, 4
    %v498 = vrot.slane %v422, 4
    %v499 = vrot.slane %v415, 4
    %v500 = vrot.slane %v416, 4
    %v501 = vrot.slane %v423, 4
    %v502 = vrot.slane %v418, 4
    %v503 = vrot.slane %v419, 4
    %v520 = vrot.slane %v397, 2
    %v521 = vrot.slane %v399, 2
    %v522 = vrot.slane %v404, 2
    %v523 = vrot.slane %v406, 2
    %v524 = vrot.slane %v425, 2
    %v525 = vrot.slane %v426, 2
    %v526 = vrot.slane %v427, 2
    %v527 = vrot.slane %v429, 2
    %v528 = vrot.slane %v430, 2
    %v529 = vrot.slane %v431, 2
    %v542 = vrot.slane %v395, 4
    %v543 = vrot.slane %v402, 4
    %v544 = vrot.slane %v425, 4
    %v545 = vrot.slane %v433, 4
    %v546 = vrot.slane %v434, 4
    %v547 = vrot.slane %v429, 4
    %v548 = vrot.slane %v436, 4
    %v549 = vrot.slane %v437, 4
    %v560 = vrot.slane %v422, 6
    %v561 = vrot.slane %v415, 6
    %v562 = vrot.slane %v416, 6
    %v563 = vrot.slane %v423, 6
    %v564 = vrot.slane %v418, 6
    %v565 = vrot.slane %v419, 6
    %v566 = vrot.slane %v438, 6
    %v567 = vrot.slane %v433, 6
    %v568 = vrot.slane %v434, 6
    %v569 = vrot.slane %v439, 6
    %v570 = vrot.slane %v436, 6
    %v571 = vrot.slane %v437, 6
    %v586 = vrot.slane %v426, 4
    %v587 = vrot.slane %v427, 4
    %v588 = vrot.slane %v430, 4
    %v589 = vrot.slane %v431, 4
    %v590 = vrot.slane %v441, 4
    %v591 = vrot.slane %v442, 4
    %v592 = vrot.slane %v443, 4
    %v593 = vrot.slane %v445, 4
    %v594 = vrot.slane %v446, 4
    %v595 = vrot.slane %v447, 4
    %v608 = vrot.slane %v425, 6
    %v609 = vrot.slane %v429, 6
    %v610 = vrot.slane %v441, 6
    %v611 = vrot.slane %v449, 6
    %v612 = vrot.slane %v450, 6
    %v613 = vrot.slane %v445, 6
    %v614 = vrot.slane %v452, 6
    %v615 = vrot.slane %v453, 6
    %vm628 = vcmask 1041408
    %v629 = vsel %vm628, %v364, %v381
    %v630 = vsel %vm628, %v381, %v468
    %v631 = vsel %vm628, %v383, %v469
    %v632 = vsel %vm628, %v385, %v470
    %v633 = vsel %vm628, %v366, %v388
    %v634 = vsel %vm628, %v388, %v471
    %v635 = vsel %vm628, %v390, %v472
    %v636 = vsel %vm628, %v392, %v473
    %v637 = vsel %vm628, %v368, %v395
    %v638 = vsel %vm628, %v395, %v474
    %v639 = vsel %vm628, %v397, %v475
    %v640 = vsel %vm628, %v399, %v476
    %v641 = vsel %vm628, %v370, %v402
    %v642 = vsel %vm628, %v402, %v477
    %v643 = vsel %vm628, %v404, %v478
    %v644 = vsel %vm628, %v406, %v479
    %vm645 = vcmask 1043456
    %v646 = vsel %vm645, %v629, %v409
    %v647 = vsel %vm645, %v630, %v492
    %v648 = vsel %vm645, %v631, %v493
    %v649 = vsel %vm645, %v632, %v494
    %v650 = vsel %vm645, %v633, %v412
    %v651 = vsel %vm645, %v634, %v495
    %v652 = vsel %vm645, %v635, %v496
    %v653 = vsel %vm645, %v636, %v497
    %v654 = vsel %vm645, %v637, %v415
    %v655 = vsel %vm645, %v638, %v498
    %v656 = vsel %vm645, %v639, %v499
    %v657 = vsel %vm645, %v640, %v500
    %v658 = vsel %vm645, %v641, %v418
    %v659 = vsel %vm645, %v642, %v501
    %v660 = vsel %vm645, %v643, %v502
    %v661 = vsel %vm645, %v644, %v503
    %vm662 = vcmask 1045504
    %v663 = vsel %vm662, %v646, %v395
    %v664 = vsel %vm662, %v647, %v474
    %v665 = vsel %vm662, %v648, %v520
    %v666 = vsel %vm662, %v649, %v521
    %v667 = vsel %vm662, %v650, %v402
    %v668 = vsel %vm662, %v651, %v477
    %v669 = vsel %vm662, %v652, %v522
    %v670 = vsel %vm662, %v653, %v523
    %v671 = vsel %vm662, %v654, %v425
    %v672 = vsel %vm662, %v655, %v524
    %v673 = vsel %vm662, %v656, %v525
    %v674 = vsel %vm662, %v657, %v526
    %v675 = vsel %vm662, %v658, %v429
    %v676 = vsel %vm662, %v659, %v527
    %v677 = vsel %vm662, %v660, %v528
    %v678 = vsel %vm662, %v661, %v529
    %v679 = vsel %vm628, %v397, %v416
    %v680 = vsel %vm628, %v542, %v560
    %v681 = vsel %vm628, %v499, %v561
    %v682 = vsel %vm628, %v500, %v562
    %v683 = vsel %vm628, %v404, %v419
    %v684 = vsel %vm628, %v543, %v563
    %v685 = vsel %vm628, %v502, %v564
    %v686 = vsel %vm628, %v503, %v565
    %v687 = vsel %vm628, %v426, %v434
    %v688 = vsel %vm628, %v544, %v566
    %v689 = vsel %vm628, %v545, %v567
    %v690 = vsel %vm628, %v546, %v568
    %v691 = vsel %vm628, %v430, %v437
    %v692 = vsel %vm628, %v547, %v569
    %v693 = vsel %vm628, %v548, %v570
    %v694 = vsel %vm628, %v549, %v571
    %v695 = vsel %vm645, %v679, %v426
    %v696 = vsel %vm645, %v680, %v544
    %v697 = vsel %vm645, %v681, %v586
    %v698 = vsel %vm645, %v682, %v587
    %v699 = vsel %vm645, %v683, %v430
    %v700 = vsel %vm645, %v684, %v547
    %v701 = vsel %vm645, %v685, %v588
    %v702 = vsel %vm645, %v686, %v589
    %v703 = vsel %vm645, %v687, %v442
    %v704 = vsel %vm645, %v688, %v590
    %v705 = vsel %vm645, %v689, %v591
    %v706 = vsel %vm645, %v690, %v592
    %v707 = vsel %vm645, %v691, %v446
    %v708 = vsel %vm645, %v692, %v593
    %v709 = vsel %vm645, %v693, %v594
    %v710 = vsel %vm645, %v694, %v595
    %v711 = vsel %vm662, %v695, %v427
    %v712 = vsel %vm662, %v696, %v608
    %v713 = vsel %vm662, %v697, %v567
    %v714 = vsel %vm662, %v698, %v568
    %v715 = vsel %vm662, %v699, %v431
    %v716 = vsel %vm662, %v700, %v609
    %v717 = vsel %vm662, %v701, %v570
    %v718 = vsel %vm662, %v702, %v571
    %v719 = vsel %vm662, %v703, %v443
    %v720 = vsel %vm662, %v704, %v610
    %v721 = vsel %vm662, %v705, %v611
    %v722 = vsel %vm662, %v706, %v612
    %v723 = vsel %vm662, %v707, %v447
    %v724 = vsel %vm662, %v708, %v613
    %v725 = vsel %vm662, %v709, %v614
    %v726 = vsel %vm662, %v710, %v615
    %v727 = vld [vmem:[%s4] sm:$0xff]
    %v728 = vld [vmem:[%s4 + $0x8] sm:$0xff]
    %v729 = vld [vmem:[%s4 + $0x10] sm:$0xff]
    %v730 = vld [vmem:[%s4 + $0x18] sm:$0xff]
    %v731 = vld [vmem:[%s4 + $0x20] sm:$0xff]
    %v732 = vld [vmem:[%s4 + $0x28] sm:$0xff]
    %v733 = vld [vmem:[%s4 + $0x30] sm:$0xff]
    %v734 = vld [vmem:[%s4 + $0x38] sm:$0xff]
    %v735 = vld [vmem:[%s4 + $0x40] sm:$0xff]
    %v736 = vld [vmem:[%s4 + $0x48] sm:$0xff]
    %v737 = vld [vmem:[%s4 + $0x50] sm:$0xff]
    %v738 = vld [vmem:[%s4 + $0x58] sm:$0xff]
    %v739 = vld [vmem:[%s4 + $0x60] sm:$0xff]
    %v740 = vld [vmem:[%s4 + $0x68] sm:$0xff]
    %v741 = vld [vmem:[%s4 + $0x70] sm:$0xff]
    %v742 = vld [vmem:[%s4 + $0x78] sm:$0xff]
    %v743 = vld [vmem:[%s4 + $0x80] sm:$0xff]
    %v744 = vld [vmem:[%s4 + $0x88] sm:$0xff]
    %v745 = vld [vmem:[%s4 + $0x90] sm:$0xff]
    %v746 = vld [vmem:[%s4 + $0x98] sm:$0xff]
    %v747 = vld [vmem:[%s4 + $0xa0] sm:$0xff]
    %v748 = vld [vmem:[%s4 + $0xa8] sm:$0xff]
    %v749 = vld [vmem:[%s4 + $0xb0] sm:$0xff]
    %v750 = vld [vmem:[%s4 + $0xb8] sm:$0xff]
    %v751 = vld [vmem:[%s4 + $0xc0] sm:$0xff]
    %v752 = vld [vmem:[%s4 + $0xc8] sm:$0xff]
    %v753 = vld [vmem:[%s4 + $0xd0] sm:$0xff]
    %v754 = vld [vmem:[%s4 + $0xd8] sm:$0xff]
    %v755 = vld [vmem:[%s4 + $0xe0] sm:$0xff]
    %v756 = vld [vmem:[%s4 + $0xe8] sm:$0xff]
    %v757 = vld [vmem:[%s4 + $0xf0] sm:$0xff]
    %v758 = vld [vmem:[%s4 + $0xf8] sm:$0xff]
    %v759 = vld [vmem:[%s4 + $0x100] sm:$0xff]
    %v760 = vld [vmem:[%s4 + $0x108] sm:$0xff]
    %v761 = vld [vmem:[%s4 + $0x110] sm:$0xff]
    %v762 = vld [vmem:[%s4 + $0x118] sm:$0xff]
    %v763 = vld [vmem:[%s4 + $0x120] sm:$0xff]
    %v764 = vld [vmem:[%s4 + $0x128] sm:$0xff]
    %v765 = vld [vmem:[%s4 + $0x130] sm:$0xff]
    %v766 = vld [vmem:[%s4 + $0x138] sm:$0xff]
    %v767 = vld [vmem:[%s4 + $0x140] sm:$0xff]
    %v768 = vld [vmem:[%s4 + $0x148] sm:$0xff]
    %v769 = vld [vmem:[%s4 + $0x150] sm:$0xff]
    %v770 = vld [vmem:[%s4 + $0x158] sm:$0xff]
    %v771 = vld [vmem:[%s4 + $0x160] sm:$0xff]
    %v772 = vld [vmem:[%s4 + $0x168] sm:$0xff]
    %v773 = vld [vmem:[%s4 + $0x170] sm:$0xff]
    %v774 = vld [vmem:[%s4 + $0x178] sm:$0xff]
    %v775 = vld [vmem:[%s4 + $0x180] sm:$0xff]
    %v776 = vld [vmem:[%s4 + $0x188] sm:$0xff]
    %v777 = vld [vmem:[%s4 + $0x190] sm:$0xff]
    %v778 = vld [vmem:[%s4 + $0x198] sm:$0xff]
    %v779 = vld [vmem:[%s4 + $0x1a0] sm:$0xff]
    %v780 = vld [vmem:[%s4 + $0x1a8] sm:$0xff]
    %v781 = vld [vmem:[%s4 + $0x1b0] sm:$0xff]
    %v782 = vld [vmem:[%s4 + $0x1b8] sm:$0xff]
    %v783 = vld [vmem:[%s4 + $0x1c0] sm:$0xff]
    %v784 = vld [vmem:[%s4 + $0x1c8] sm:$0xff]
    %v785 = vld [vmem:[%s4 + $0x1d0] sm:$0xff]
    %v786 = vld [vmem:[%s4 + $0x1d8] sm:$0xff]
    %v787 = vld [vmem:[%s4 + $0x1e0] sm:$0xff]
    %v788 = vld [vmem:[%s4 + $0x1e8] sm:$0xff]
    %v789 = vld [vmem:[%s4 + $0x1f0] sm:$0xff]
    %v790 = vld [vmem:[%s4 + $0x1f8] sm:$0xff]
    %v791 = vld [vmem:[%s4 + $0x200] sm:$0xff]
    %v792 = vld [vmem:[%s4 + $0x208] sm:$0xff]
    %v793 = vld [vmem:[%s4 + $0x210] sm:$0xff]
    %v794 = vld [vmem:[%s4 + $0x218] sm:$0xff]
    %v795 = vld [vmem:[%s4 + $0x220] sm:$0xff]
    %v796 = vld [vmem:[%s4 + $0x228] sm:$0xff]
    %v797 = vld [vmem:[%s4 + $0x230] sm:$0xff]
    %v798 = vld [vmem:[%s4 + $0x238] sm:$0xff]
    %v799 = vld [vmem:[%s4 + $0x240] sm:$0xff]
    %v800 = vld [vmem:[%s4 + $0x248] sm:$0xff]
    %v801 = vld [vmem:[%s4 + $0x250] sm:$0xff]
    %v802 = vld [vmem:[%s4 + $0x258] sm:$0xff]
    %v803 = vld [vmem:[%s4 + $0x260] sm:$0xff]
    %v804 = vld [vmem:[%s4 + $0x268] sm:$0xff]
    %v805 = vld [vmem:[%s4 + $0x270] sm:$0xff]
    %v806 = vld [vmem:[%s4 + $0x278] sm:$0xff]
    %v807 = vld [vmem:[%s4 + $0x280] sm:$0xff]
    %v808 = vld [vmem:[%s4 + $0x288] sm:$0xff]
    %v809 = vld [vmem:[%s4 + $0x290] sm:$0xff]
    %v810 = vld [vmem:[%s4 + $0x298] sm:$0xff]
    %v811 = vld [vmem:[%s4 + $0x2a0] sm:$0xff]
    %v812 = vld [vmem:[%s4 + $0x2a8] sm:$0xff]
    %v813 = vld [vmem:[%s4 + $0x2b0] sm:$0xff]
    %v814 = vld [vmem:[%s4 + $0x2b8] sm:$0xff]
    %v815 = vld [vmem:[%s4 + $0x2c0] sm:$0xff]
    %v816 = vld [vmem:[%s4 + $0x2c8] sm:$0xff]
    %v817 = vld [vmem:[%s4 + $0x2d0] sm:$0xff]
    %v818 = vld [vmem:[%s4 + $0x2d8] sm:$0xff]
    %v819 = vld [vmem:[%s4 + $0x2e0] sm:$0xff]
    %v820 = vld [vmem:[%s4 + $0x2e8] sm:$0xff]
    %v821 = vld [vmem:[%s4 + $0x2f0] sm:$0xff]
    %v822 = vld [vmem:[%s4 + $0x2f8] sm:$0xff]
    %v823 = vld [vmem:[%s4 + $0x300] sm:$0xff]
    %v824 = vld [vmem:[%s4 + $0x308] sm:$0xff]
    %v825 = vld [vmem:[%s4 + $0x310] sm:$0xff]
    %v826 = vld [vmem:[%s4 + $0x318] sm:$0xff]
    %v827 = vld [vmem:[%s4 + $0x320] sm:$0xff]
    %v828 = vld [vmem:[%s4 + $0x328] sm:$0xff]
    %v829 = vld [vmem:[%s4 + $0x330] sm:$0xff]
    %v830 = vld [vmem:[%s4 + $0x338] sm:$0xff]
    %v831 = vld [vmem:[%s4 + $0x340] sm:$0xff]
    %v832 = vld [vmem:[%s4 + $0x348] sm:$0xff]
    %v833 = vld [vmem:[%s4 + $0x350] sm:$0xff]
    %v834 = vld [vmem:[%s4 + $0x358] sm:$0xff]
    %v835 = vld [vmem:[%s4 + $0x360] sm:$0xff]
    %v836 = vld [vmem:[%s4 + $0x368] sm:$0xff]
    %v837 = vld [vmem:[%s4 + $0x370] sm:$0xff]
    %v838 = vld [vmem:[%s4 + $0x378] sm:$0xff]
    %v839 = vld [vmem:[%s4 + $0x380] sm:$0xff]
    %v840 = vld [vmem:[%s4 + $0x388] sm:$0xff]
    %v841 = vld [vmem:[%s4 + $0x390] sm:$0xff]
    %v842 = vld [vmem:[%s4 + $0x398] sm:$0xff]
    %v843 = vld [vmem:[%s4 + $0x3a0] sm:$0xff]
    %v844 = vld [vmem:[%s4 + $0x3a8] sm:$0xff]
    %v845 = vld [vmem:[%s4 + $0x3b0] sm:$0xff]
    %v846 = vld [vmem:[%s4 + $0x3b8] sm:$0xff]
    %v847 = vld [vmem:[%s4 + $0x3c0] sm:$0xff]
    %v848 = vld [vmem:[%s4 + $0x3c8] sm:$0xff]
    %v849 = vld [vmem:[%s4 + $0x3d0] sm:$0xff]
    %v850 = vld [vmem:[%s4 + $0x3d8] sm:$0xff]
    %v851 = vld [vmem:[%s4 + $0x3e0] sm:$0xff]
    %v852 = vld [vmem:[%s4 + $0x3e8] sm:$0xff]
    %v853 = vld [vmem:[%s4 + $0x3f0] sm:$0xff]
    %v854 = vld [vmem:[%s4 + $0x3f8] sm:$0xff]
    %v855 = vld [vmem:[%s4 + $0x400] sm:$0xff]
    %v856 = vld [vmem:[%s4 + $0x408] sm:$0xff]
    %v857 = vld [vmem:[%s4 + $0x410] sm:$0xff]
    %v858 = vld [vmem:[%s4 + $0x418] sm:$0xff]
    %v859 = vld [vmem:[%s4 + $0x420] sm:$0xff]
    %v860 = vld [vmem:[%s4 + $0x428] sm:$0xff]
    %v861 = vld [vmem:[%s4 + $0x430] sm:$0xff]
    %v862 = vld [vmem:[%s4 + $0x438] sm:$0xff]
    %v863 = vld [vmem:[%s4 + $0x440] sm:$0xff]
    %v864 = vld [vmem:[%s4 + $0x448] sm:$0xff]
    %v865 = vld [vmem:[%s4 + $0x450] sm:$0xff]
    %v866 = vld [vmem:[%s4 + $0x458] sm:$0xff]
    %v867 = vld [vmem:[%s4 + $0x460] sm:$0xff]
    %v868 = vld [vmem:[%s4 + $0x468] sm:$0xff]
    %v869 = vld [vmem:[%s4 + $0x470] sm:$0xff]
    %v870 = vld [vmem:[%s4 + $0x478] sm:$0xff]
    %v871 = vld [vmem:[%s4 + $0x480] sm:$0xff]
    %v872 = vld [vmem:[%s4 + $0x488] sm:$0xff]
    %v873 = vld [vmem:[%s4 + $0x490] sm:$0xff]
    %v874 = vld [vmem:[%s4 + $0x498] sm:$0xff]
    %v875 = vld [vmem:[%s4 + $0x4a0] sm:$0xff]
    %v876 = vld [vmem:[%s4 + $0x4a8] sm:$0xff]
    %v877 = vld [vmem:[%s4 + $0x4b0] sm:$0xff]
    %v878 = vld [vmem:[%s4 + $0x4b8] sm:$0xff]
    %v879 = vld [vmem:[%s4 + $0x4c0] sm:$0xff]
    %v880 = vld [vmem:[%s4 + $0x4c8] sm:$0xff]
    %v881 = vld [vmem:[%s4 + $0x4d0] sm:$0xff]
    %v882 = vld [vmem:[%s4 + $0x4d8] sm:$0xff]
    %v883 = vld [vmem:[%s4 + $0x4e0] sm:$0xff]
    %v884 = vld [vmem:[%s4 + $0x4e8] sm:$0xff]
    %v885 = vld [vmem:[%s4 + $0x4f0] sm:$0xff]
    %v886 = vld [vmem:[%s4 + $0x4f8] sm:$0xff]
    %v887 = vld [vmem:[%s4 + $0x500] sm:$0xff]
    %v888 = vld [vmem:[%s4 + $0x508] sm:$0xff]
    %v889 = vld [vmem:[%s4 + $0x510] sm:$0xff]
    %v890 = vld [vmem:[%s4 + $0x518] sm:$0xff]
    %v891 = vld [vmem:[%s4 + $0x520] sm:$0xff]
    %v892 = vld [vmem:[%s4 + $0x528] sm:$0xff]
    %v893 = vld [vmem:[%s4 + $0x530] sm:$0xff]
    %v894 = vld [vmem:[%s4 + $0x538] sm:$0xff]
    %v895 = vld [vmem:[%s4 + $0x540] sm:$0xff]
    %v896 = vld [vmem:[%s4 + $0x548] sm:$0xff]
    %v897 = vld [vmem:[%s4 + $0x550] sm:$0xff]
    %v898 = vld [vmem:[%s4 + $0x558] sm:$0xff]
    %v899 = vld [vmem:[%s4 + $0x560] sm:$0xff]
    %v900 = vld [vmem:[%s4 + $0x568] sm:$0xff]
    %v901 = vld [vmem:[%s4 + $0x570] sm:$0xff]
    %v902 = vld [vmem:[%s4 + $0x578] sm:$0xff]
    %v903 = vld [vmem:[%s4 + $0x580] sm:$0xff]
    %v904 = vld [vmem:[%s4 + $0x588] sm:$0xff]
    %v905 = vld [vmem:[%s4 + $0x590] sm:$0xff]
    %v906 = vld [vmem:[%s4 + $0x598] sm:$0xff]
    %v907 = vld [vmem:[%s4 + $0x5a0] sm:$0xff]
    %v908 = vld [vmem:[%s4 + $0x5a8] sm:$0xff]
    %v909 = vld [vmem:[%s4 + $0x5b0] sm:$0xff]
    %v910 = vld [vmem:[%s4 + $0x5b8] sm:$0xff]
    %v911 = vld [vmem:[%s4 + $0x5c0] sm:$0xff]
    %v912 = vld [vmem:[%s4 + $0x5c8] sm:$0xff]
    %v913 = vld [vmem:[%s4 + $0x5d0] sm:$0xff]
    %v914 = vld [vmem:[%s4 + $0x5d8] sm:$0xff]
    %v915 = vld [vmem:[%s4 + $0x5e0] sm:$0xff]
    %v916 = vld [vmem:[%s4 + $0x5e8] sm:$0xff]
    %v917 = vld [vmem:[%s4 + $0x5f0] sm:$0xff]
    %v918 = vld [vmem:[%s4 + $0x5f8] sm:$0xff]
    %v919 = vld [vmem:[%s4 + $0x600] sm:$0xff]
    %v920 = vld [vmem:[%s4 + $0x608] sm:$0xff]
    %v921 = vld [vmem:[%s4 + $0x610] sm:$0xff]
    %v922 = vld [vmem:[%s4 + $0x618] sm:$0xff]
    %v923 = vld [vmem:[%s4 + $0x620] sm:$0xff]
    %v924 = vld [vmem:[%s4 + $0x628] sm:$0xff]
    %v925 = vld [vmem:[%s4 + $0x630] sm:$0xff]
    %v926 = vld [vmem:[%s4 + $0x638] sm:$0xff]
    %v927 = vld [vmem:[%s4 + $0x640] sm:$0xff]
    %v928 = vld [vmem:[%s4 + $0x648] sm:$0xff]
    %v929 = vld [vmem:[%s4 + $0x650] sm:$0xff]
    %v930 = vld [vmem:[%s4 + $0x658] sm:$0xff]
    %v931 = vld [vmem:[%s4 + $0x660] sm:$0xff]
    %v932 = vld [vmem:[%s4 + $0x668] sm:$0xff]
    %v933 = vld [vmem:[%s4 + $0x670] sm:$0xff]
    %v934 = vld [vmem:[%s4 + $0x678] sm:$0xff]
    %v935 = vld [vmem:[%s4 + $0x680] sm:$0xff]
    %v936 = vld [vmem:[%s4 + $0x688] sm:$0xff]
    %v937 = vld [vmem:[%s4 + $0x690] sm:$0xff]
    %v938 = vld [vmem:[%s4 + $0x698] sm:$0xff]
    %v939 = vld [vmem:[%s4 + $0x6a0] sm:$0xff]
    %v940 = vld [vmem:[%s4 + $0x6a8] sm:$0xff]
    %v941 = vld [vmem:[%s4 + $0x6b0] sm:$0xff]
    %v942 = vld [vmem:[%s4 + $0x6b8] sm:$0xff]
    %v943 = vld [vmem:[%s4 + $0x6c0] sm:$0xff]
    %v944 = vld [vmem:[%s4 + $0x6c8] sm:$0xff]
    %v945 = vld [vmem:[%s4 + $0x6d0] sm:$0xff]
    %v946 = vld [vmem:[%s4 + $0x6d8] sm:$0xff]
    %v947 = vld [vmem:[%s4 + $0x6e0] sm:$0xff]
    %v948 = vld [vmem:[%s4 + $0x6e8] sm:$0xff]
    %v949 = vld [vmem:[%s4 + $0x6f0] sm:$0xff]
    %v950 = vld [vmem:[%s4 + $0x6f8] sm:$0xff]
    %v951 = vld [vmem:[%s4 + $0x700] sm:$0xff]
    %v952 = vld [vmem:[%s4 + $0x708] sm:$0xff]
    %v953 = vld [vmem:[%s4 + $0x710] sm:$0xff]
    %v954 = vld [vmem:[%s4 + $0x718] sm:$0xff]
    %v955 = vld [vmem:[%s4 + $0x720] sm:$0xff]
    %v956 = vld [vmem:[%s4 + $0x728] sm:$0xff]
    %v957 = vld [vmem:[%s4 + $0x730] sm:$0xff]
    %v958 = vld [vmem:[%s4 + $0x738] sm:$0xff]
    %v959 = vld [vmem:[%s4 + $0x740] sm:$0xff]
    %v960 = vld [vmem:[%s4 + $0x748] sm:$0xff]
    %v961 = vld [vmem:[%s4 + $0x750] sm:$0xff]
    %v962 = vld [vmem:[%s4 + $0x758] sm:$0xff]
    %v963 = vld [vmem:[%s4 + $0x760] sm:$0xff]
    %v964 = vld [vmem:[%s4 + $0x768] sm:$0xff]
    %v965 = vld [vmem:[%s4 + $0x770] sm:$0xff]
    %v966 = vld [vmem:[%s4 + $0x778] sm:$0xff]
    %v967 = vld [vmem:[%s4 + $0x780] sm:$0xff]
    %v968 = vld [vmem:[%s4 + $0x788] sm:$0xff]
    %v969 = vld [vmem:[%s4 + $0x790] sm:$0xff]
    %v970 = vld [vmem:[%s4 + $0x798] sm:$0xff]
    %v971 = vld [vmem:[%s4 + $0x7a0] sm:$0xff]
    %v972 = vld [vmem:[%s4 + $0x7a8] sm:$0xff]
    %v973 = vld [vmem:[%s4 + $0x7b0] sm:$0xff]
    %v974 = vld [vmem:[%s4 + $0x7b8] sm:$0xff]
    %v975 = vld [vmem:[%s4 + $0x7c0] sm:$0xff]
    %v976 = vld [vmem:[%s4 + $0x7c8] sm:$0xff]
    %v977 = vld [vmem:[%s4 + $0x7d0] sm:$0xff]
    %v978 = vld [vmem:[%s4 + $0x7d8] sm:$0xff]
    %v979 = vld [vmem:[%s4 + $0x7e0] sm:$0xff]
    %v980 = vld [vmem:[%s4 + $0x7e8] sm:$0xff]
    %v981 = vld [vmem:[%s4 + $0x7f0] sm:$0xff]
    %v982 = vld [vmem:[%s4 + $0x7f8] sm:$0xff]
    %983 = vmatprep.subr.mxu0 0.0
    %984 = vmatpush1.msra.mxu0 %v727
    %985 = vmatprep.subr.mxu0 0.0
    %986 = vmatpush1.msra.mxu0 %v728
    %987 = vmatprep.subr.mxu0 0.0
    %988 = vmatpush1.msra.mxu0 %v729
    %989 = vmatprep.subr.mxu0 0.0
    %990 = vmatpush1.msra.mxu0 %v730
    %991 = vmatprep.subr.mxu0 0.0
    %992 = vmatpush1.msra.mxu0 %v731
    %993 = vmatprep.subr.mxu0 0.0
    %994 = vmatpush1.msra.mxu0 %v732
    %995 = vmatprep.subr.mxu0 0.0
    %996 = vmatpush1.msra.mxu0 %v733
    %997 = vmatprep.subr.mxu0 0.0
    %998 = vmatpush1.msra.mxu0 %v734
    %999 = vmatprep.subr.mxu0 0.0
    %1000 = vmatpush1.msra.mxu0 %v735
    %1001 = vmatprep.subr.mxu0 0.0
    %1002 = vmatpush1.msra.mxu0 %v736
    %1003 = vmatprep.subr.mxu0 0.0
    %1004 = vmatpush1.msra.mxu0 %v737
    %1005 = vmatprep.subr.mxu0 0.0
    %1006 = vmatpush1.msra.mxu0 %v738
    %1007 = vmatprep.subr.mxu0 0.0
    %1008 = vmatpush1.msra.mxu0 %v739
    %1009 = vmatprep.subr.mxu0 0.0
    %1010 = vmatpush1.msra.mxu0 %v740
    %1011 = vmatprep.subr.mxu0 0.0
    %1012 = vmatpush1.msra.mxu0 %v741
    %1013 = vmatprep.subr.mxu0 0.0
    %1014 = vmatpush1.msra.mxu0 %v742
    %1015 = vmatprep.subr.mxu0 0.0
    %1016 = vmatpush1.msra.mxu0 %v743
    %1017 = vmatprep.subr.mxu0 0.0
    %1018 = vmatpush1.msra.mxu0 %v744
    %1019 = vmatprep.subr.mxu0 0.0
    %1020 = vmatpush1.msra.mxu0 %v745
    %1021 = vmatprep.subr.mxu0 0.0
    %1022 = vmatpush1.msra.mxu0 %v746
    %1023 = vmatprep.subr.mxu0 0.0
    %1024 = vmatpush1.msra.mxu0 %v747
    %1025 = vmatprep.subr.mxu0 0.0
    %1026 = vmatpush1.msra.mxu0 %v748
    %1027 = vmatprep.subr.mxu0 0.0
    %1028 = vmatpush1.msra.mxu0 %v749
    %1029 = vmatprep.subr.mxu0 0.0
    %1030 = vmatpush1.msra.mxu0 %v750
    %1031 = vmatprep.subr.mxu0 0.0
    %1032 = vmatpush1.msra.mxu0 %v751
    %1033 = vmatprep.subr.mxu0 0.0
    %1034 = vmatpush1.msra.mxu0 %v752
    %1035 = vmatprep.subr.mxu0 0.0
    %1036 = vmatpush1.msra.mxu0 %v753
    %1037 = vmatprep.subr.mxu0 0.0
    %1038 = vmatpush1.msra.mxu0 %v754
    %1039 = vmatprep.subr.mxu0 0.0
    %1040 = vmatpush1.msra.mxu0 %v755
    %1041 = vmatprep.subr.mxu0 0.0
    %1042 = vmatpush1.msra.mxu0 %v756
    %1043 = vmatprep.subr.mxu0 0.0
    %1044 = vmatpush1.msra.mxu0 %v757
    %1045 = vmatprep.subr.mxu0 0.0
    %1046 = vmatpush1.msra.mxu0 %v758
    %1047 = vmatprep.mubr.f32.mxu0 %v664
    %1048 = vmatmul.mubr.f32.gmra.mrb[0].mxu0 %v663
    %v1049 = vpop.f32.mrb[0].mxu0
    %v1050 = vadd.f32 0.0, %v1049
    %v1051 = vpop.f32.mrb[0].mxu0
    %1052 = vmatprep.mubr.f32.mxu0 %v712
    %1053 = vmatmul.mubr.f32.gmra.mrb[0].mxu0 %v711
    %v1054 = vpop.f32.mrb[0].mxu0
    %v1055 = vadd.f32 0.0, %v1054
    %v1056 = vpop.f32.mrb[0].mxu0
    %1057 = vmatprep.mubr.f32.mxu0 %v438
    %1058 = vmatmul.mubr.f32.gmra.mrb[0].mxu0 %v373
    %v1059 = vpop.f32.mrb[0].mxu0
    %v1060 = vadd.f32 0.0, %v1059
    %v1061 = vpop.f32.mrb[0].mxu0
    %1062 = vdwg.mxu0
    %1063 = vmatprep.subr.mxu0 0.0
    %1064 = vmatpush1.msra.mxu0 %v759
    %1065 = vmatprep.subr.mxu0 0.0
    %1066 = vmatpush1.msra.mxu0 %v760
    %1067 = vmatprep.subr.mxu0 0.0
    %1068 = vmatpush1.msra.mxu0 %v761
    %1069 = vmatprep.subr.mxu0 0.0
    %1070 = vmatpush1.msra.mxu0 %v762
    %1071 = vmatprep.subr.mxu0 0.0
    %1072 = vmatpush1.msra.mxu0 %v763
    %1073 = vmatprep.subr.mxu0 0.0
    %1074 = vmatpush1.msra.mxu0 %v764
    %1075 = vmatprep.subr.mxu0 0.0
    %1076 = vmatpush1.msra.mxu0 %v765
    %1077 = vmatprep.subr.mxu0 0.0
    %1078 = vmatpush1.msra.mxu0 %v766
    %1079 = vmatprep.subr.mxu0 0.0
    %1080 = vmatpush1.msra.mxu0 %v767
    %1081 = vmatprep.subr.mxu0 0.0
    %1082 = vmatpush1.msra.mxu0 %v768
    %1083 = vmatprep.subr.mxu0 0.0
    %1084 = vmatpush1.msra.mxu0 %v769
    %1085 = vmatprep.subr.mxu0 0.0
    %1086 = vmatpush1.msra.mxu0 %v770
    %1087 = vmatprep.subr.mxu0 0.0
    %1088 = vmatpush1.msra.mxu0 %v771
    %1089 = vmatprep.subr.mxu0 0.0
    %1090 = vmatpush1.msra.mxu0 %v772
    %1091 = vmatprep.subr.mxu0 0.0
    %1092 = vmatpush1.msra.mxu0 %v773
    %1093 = vmatprep.subr.mxu0 0.0
    %1094 = vmatpush1.msra.mxu0 %v774
    %1095 = vmatprep.subr.mxu0 0.0
    %1096 = vmatpush1.msra.mxu0 %v775
    %1097 = vmatprep.subr.mxu0 0.0
    %1098 = vmatpush1.msra.mxu0 %v776
    %1099 = vmatprep.subr.mxu0 0.0
    %1100 = vmatpush1.msra.mxu0 %v777
    %1101 = vmatprep.subr.mxu0 0.0
    %1102 = vmatpush1.msra.mxu0 %v778
    %1103 = vmatprep.subr.mxu0 0.0
    %1104 = vmatpush1.msra.mxu0 %v779
    %1105 = vmatprep.subr.mxu0 0.0
    %1106 = vmatpush1.msra.mxu0 %v780
    %1107 = vmatprep.subr.mxu0 0.0
    %1108 = vmatpush1.msra.mxu0 %v781
    %1109 = vmatprep.subr.mxu0 0.0
    %1110 = vmatpush1.msra.mxu0 %v782
    %1111 = vmatprep.subr.mxu0 0.0
    %1112 = vmatpush1.msra.mxu0 %v783
    %1113 = vmatprep.subr.mxu0 0.0
    %1114 = vmatpush1.msra.mxu0 %v784
    %1115 = vmatprep.subr.mxu0 0.0
    %1116 = vmatpush1.msra.mxu0 %v785
    %1117 = vmatprep.subr.mxu0 0.0
    %1118 = vmatpush1.msra.mxu0 %v786
    %1119 = vmatprep.subr.mxu0 0.0
    %1120 = vmatpush1.msra.mxu0 %v787
    %1121 = vmatprep.subr.mxu0 0.0
    %1122 = vmatpush1.msra.mxu0 %v788
    %1123 = vmatprep.subr.mxu0 0.0
    %1124 = vmatpush1.msra.mxu0 %v789
    %1125 = vmatprep.subr.mxu0 0.0
    %1126 = vmatpush1.msra.mxu0 %v790
    %1127 = vmatprep.mubr.f32.mxu0 %v666
    %1128 = vmatmul.mubr.f32.gmra.mrb[0].mxu0 %v665
    %v1129 = vpop.f32.mrb[0].mxu0
    %v1130 = vadd.f32 %v1050, %v1129
    %v1131 = vpop.f32.mrb[0].mxu0
    %1132 = vmatprep.mubr.f32.mxu0 %v714
    %1133 = vmatmul.mubr.f32.gmra.mrb[0].mxu0 %v713
    %v1134 = vpop.f32.mrb[0].mxu0
    %v1135 = vadd.f32 %v1055, %v1134
    %v1136 = vpop.f32.mrb[0].mxu0
    %1137 = vmatprep.mubr.f32.mxu0 %v434
    %1138 = vmatmul.mubr.f32.gmra.mrb[0].mxu0 %v433
    %v1139 = vpop.f32.mrb[0].mxu0
    %v1140 = vadd.f32 %v1060, %v1139
    %v1141 = vpop.f32.mrb[0].mxu0
    %1142 = vdwg.mxu0
    %1143 = vmatprep.subr.mxu0 0.0
    %1144 = vmatpush1.msra.mxu0 %v791
    %1145 = vmatprep.subr.mxu0 0.0
    %1146 = vmatpush1.msra.mxu0 %v792
    %1147 = vmatprep.subr.mxu0 0.0
    %1148 = vmatpush1.msra.mxu0 %v793
    %1149 = vmatprep.subr.mxu0 0.0
    %1150 = vmatpush1.msra.mxu0 %v794
    %1151 = vmatprep.subr.mxu0 0.0
    %1152 = vmatpush1.msra.mxu0 %v795
    %1153 = vmatprep.subr.mxu0 0.0
    %1154 = vmatpush1.msra.mxu0 %v796
    %1155 = vmatprep.subr.mxu0 0.0
    %1156 = vmatpush1.msra.mxu0 %v797
    %1157 = vmatprep.subr.mxu0 0.0
    %1158 = vmatpush1.msra.mxu0 %v798
    %1159 = vmatprep.subr.mxu0 0.0
    %1160 = vmatpush1.msra.mxu0 %v799
    %1161 = vmatprep.subr.mxu0 0.0
    %1162 = vmatpush1.msra.mxu0 %v800
    %1163 = vmatprep.subr.mxu0 0.0
    %1164 = vmatpush1.msra.mxu0 %v801
    %1165 = vmatprep.subr.mxu0 0.0
    %1166 = vmatpush1.msra.mxu0 %v802
    %1167 = vmatprep.subr.mxu0 0.0
    %1168 = vmatpush1.msra.mxu0 %v803
    %1169 = vmatprep.subr.mxu0 0.0
    %1170 = vmatpush1.msra.mxu0 %v804
    %1171 = vmatprep.subr.mxu0 0.0
    %1172 = vmatpush1.msra.mxu0 %v805
    %1173 = vmatprep.subr.mxu0 0.0
    %1174 = vmatpush1.msra.mxu0 %v806
    %1175 = vmatprep.subr.mxu0 0.0
    %1176 = vmatpush1.msra.mxu0 %v807
    %1177 = vmatprep.subr.mxu0 0.0
    %1178 = vmatpush1.msra.mxu0 %v808
    %1179 = vmatprep.subr.mxu0 0.0
    %1180 = vmatpush1.msra.mxu0 %v809
    %1181 = vmatprep.subr.mxu0 0.0
    %1182 = vmatpush1.msra.mxu0 %v810
    %1183 = vmatprep.subr.mxu0 0.0
    %1184 = vmatpush1.msra.mxu0 %v811
    %1185 = vmatprep.subr.mxu0 0.0
    %1186 = vmatpush1.msra.mxu0 %v812
    %1187 = vmatprep.subr.mxu0 0.0
    %1188 = vmatpush1.msra.mxu0 %v813
    %1189 = vmatprep.subr.mxu0 0.0
    %1190 = vmatpush1.msra.mxu0 %v814
    %1191 = vmatprep.subr.mxu0 0.0
    %1192 = vmatpush1.msra.mxu0 %v815
    %1193 = vmatprep.subr.mxu0 0.0
    %1194 = vmatpush1.msra.mxu0 %v816
    %1195 = vmatprep.subr.mxu0 0.0
    %1196 = vmatpush1.msra.mxu0 %v817
    %1197 = vmatprep.subr.mxu0 0.0
    %1198 = vmatpush1.msra.mxu0 %v818
    %1199 = vmatprep.subr.mxu0 0.0
    %1200 = vmatpush1.msra.mxu0 %v819
    %1201 = vmatprep.subr.mxu0 0.0
    %1202 = vmatpush1.msra.mxu0 %v820
    %1203 = vmatprep.subr.mxu0 0.0
    %1204 = vmatpush1.msra.mxu0 %v821
    %1205 = vmatprep.subr.mxu0 0.0
    %1206 = vmatpush1.msra.mxu0 %v822
    %1207 = vmatprep.mubr.f32.mxu0 %v668
    %1208 = vmatmul.mubr.f32.gmra.mrb[0].mxu0 %v667
    %v1209 = vpop.f32.mrb[0].mxu0
    %v1210 = vadd.f32 %v1130, %v1209
    %v1211 = vpop.f32.mrb[0].mxu0
    %1212 = vmatprep.mubr.f32.mxu0 %v716
    %1213 = vmatmul.mubr.f32.gmra.mrb[0].mxu0 %v715
    %v1214 = vpop.f32.mrb[0].mxu0
    %v1215 = vadd.f32 %v1135, %v1214
    %v1216 = vpop.f32.mrb[0].mxu0
    %1217 = vmatprep.mubr.f32.mxu0 %v439
    %1218 = vmatmul.mubr.f32.gmra.mrb[0].mxu0 %v375
    %v1219 = vpop.f32.mrb[0].mxu0
    %v1220 = vadd.f32 %v1140, %v1219
    %v1221 = vpop.f32.mrb[0].mxu0
    %1222 = vdwg.mxu0
    %1223 = vmatprep.subr.mxu0 0.0
    %1224 = vmatpush1.msra.mxu0 %v823
    %1225 = vmatprep.subr.mxu0 0.0
    %1226 = vmatpush1.msra.mxu0 %v824
    %1227 = vmatprep.subr.mxu0 0.0
    %1228 = vmatpush1.msra.mxu0 %v825
    %1229 = vmatprep.subr.mxu0 0.0
    %1230 = vmatpush1.msra.mxu0 %v826
    %1231 = vmatprep.subr.mxu0 0.0
    %1232 = vmatpush1.msra.mxu0 %v827
    %1233 = vmatprep.subr.mxu0 0.0
    %1234 = vmatpush1.msra.mxu0 %v828
    %1235 = vmatprep.subr.mxu0 0.0
    %1236 = vmatpush1.msra.mxu0 %v829
    %1237 = vmatprep.subr.mxu0 0.0
    %1238 = vmatpush1.msra.mxu0 %v830
    %1239 = vmatprep.subr.mxu0 0.0
    %1240 = vmatpush1.msra.mxu0 %v831
    %1241 = vmatprep.subr.mxu0 0.0
    %1242 = vmatpush1.msra.mxu0 %v832
    %1243 = vmatprep.subr.mxu0 0.0
    %1244 = vmatpush1.msra.mxu0 %v833
    %1245 = vmatprep.subr.mxu0 0.0
    %1246 = vmatpush1.msra.mxu0 %v834
    %1247 = vmatprep.subr.mxu0 0.0
    %1248 = vmatpush1.msra.mxu0 %v835
    %1249 = vmatprep.subr.mxu0 0.0
    %1250 = vmatpush1.msra.mxu0 %v836
    %1251 = vmatprep.subr.mxu0 0.0
    %1252 = vmatpush1.msra.mxu0 %v837
    %1253 = vmatprep.subr.mxu0 0.0
    %1254 = vmatpush1.msra.mxu0 %v838
    %1255 = vmatprep.subr.mxu0 0.0
    %1256 = vmatpush1.msra.mxu0 %v839
    %1257 = vmatprep.subr.mxu0 0.0
    %1258 = vmatpush1.msra.mxu0 %v840
    %1259 = vmatprep.subr.mxu0 0.0
    %1260 = vmatpush1.msra.mxu0 %v841
    %1261 = vmatprep.subr.mxu0 0.0
    %1262 = vmatpush1.msra.mxu0 %v842
    %1263 = vmatprep.subr.mxu0 0.0
    %1264 = vmatpush1.msra.mxu0 %v843
    %1265 = vmatprep.subr.mxu0 0.0
    %1266 = vmatpush1.msra.mxu0 %v844
    %1267 = vmatprep.subr.mxu0 0.0
    %1268 = vmatpush1.msra.mxu0 %v845
    %1269 = vmatprep.subr.mxu0 0.0
    %1270 = vmatpush1.msra.mxu0 %v846
    %1271 = vmatprep.subr.mxu0 0.0
    %1272 = vmatpush1.msra.mxu0 %v847
    %1273 = vmatprep.subr.mxu0 0.0
    %1274 = vmatpush1.msra.mxu0 %v848
    %1275 = vmatprep.subr.mxu0 0.0
    %1276 = vmatpush1.msra.mxu0 %v849
    %1277 = vmatprep.subr.mxu0 0.0
    %1278 = vmatpush1.msra.mxu0 %v850
    %1279 = vmatprep.subr.mxu0 0.0
    %1280 = vmatpush1.msra.mxu0 %v851
    %1281 = vmatprep.subr.mxu0 0.0
    %1282 = vmatpush1.msra.mxu0 %v852
    %1283 = vmatprep.subr.mxu0 0.0
    %1284 = vmatpush1.msra.mxu0 %v853
    %1285 = vmatprep.subr.mxu0 0.0
    %1286 = vmatpush1.msra.mxu0 %v854
    %1287 = vmatprep.mubr.f32.mxu0 %v670
    %1288 = vmatmul.mubr.f32.gmra.mrb[0].mxu0 %v669
    %v1289 = vpop.f32.mrb[0].mxu0
    %v1290 = vadd.f32 %v1210, %v1289
    %v1291 = vpop.f32.mrb[0].mxu0
    %1292 = vmatprep.mubr.f32.mxu0 %v718
    %1293 = vmatmul.mubr.f32.gmra.mrb[0].mxu0 %v717
    %v1294 = vpop.f32.mrb[0].mxu0
    %v1295 = vadd.f32 %v1215, %v1294
    %v1296 = vpop.f32.mrb[0].mxu0
    %1297 = vmatprep.mubr.f32.mxu0 %v437
    %1298 = vmatmul.mubr.f32.gmra.mrb[0].mxu0 %v436
    %v1299 = vpop.f32.mrb[0].mxu0
    %v1300 = vadd.f32 %v1220, %v1299
    %v1301 = vpop.f32.mrb[0].mxu0
    %1302 = vdwg.mxu0
    %1303 = vmatprep.subr.mxu0 0.0
    %1304 = vmatpush1.msra.mxu0 %v855
    %1305 = vmatprep.subr.mxu0 0.0
    %1306 = vmatpush1.msra.mxu0 %v856
    %1307 = vmatprep.subr.mxu0 0.0
    %1308 = vmatpush1.msra.mxu0 %v857
    %1309 = vmatprep.subr.mxu0 0.0
    %1310 = vmatpush1.msra.mxu0 %v858
    %1311 = vmatprep.subr.mxu0 0.0
    %1312 = vmatpush1.msra.mxu0 %v859
    %1313 = vmatprep.subr.mxu0 0.0
    %1314 = vmatpush1.msra.mxu0 %v860
    %1315 = vmatprep.subr.mxu0 0.0
    %1316 = vmatpush1.msra.mxu0 %v861
    %1317 = vmatprep.subr.mxu0 0.0
    %1318 = vmatpush1.msra.mxu0 %v862
    %1319 = vmatprep.subr.mxu0 0.0
    %1320 = vmatpush1.msra.mxu0 %v863
    %1321 = vmatprep.subr.mxu0 0.0
    %1322 = vmatpush1.msra.mxu0 %v864
    %1323 = vmatprep.subr.mxu0 0.0
    %1324 = vmatpush1.msra.mxu0 %v865
    %1325 = vmatprep.subr.mxu0 0.0
    %1326 = vmatpush1.msra.mxu0 %v866
    %1327 = vmatprep.subr.mxu0 0.0
    %1328 = vmatpush1.msra.mxu0 %v867
    %1329 = vmatprep.subr.mxu0 0.0
    %1330 = vmatpush1.msra.mxu0 %v868
    %1331 = vmatprep.subr.mxu0 0.0
    %1332 = vmatpush1.msra.mxu0 %v869
    %1333 = vmatprep.subr.mxu0 0.0
    %1334 = vmatpush1.msra.mxu0 %v870
    %1335 = vmatprep.subr.mxu0 0.0
    %1336 = vmatpush1.msra.mxu0 %v871
    %1337 = vmatprep.subr.mxu0 0.0
    %1338 = vmatpush1.msra.mxu0 %v872
    %1339 = vmatprep.subr.mxu0 0.0
    %1340 = vmatpush1.msra.mxu0 %v873
    %1341 = vmatprep.subr.mxu0 0.0
    %1342 = vmatpush1.msra.mxu0 %v874
    %1343 = vmatprep.subr.mxu0 0.0
    %1344 = vmatpush1.msra.mxu0 %v875
    %1345 = vmatprep.subr.mxu0 0.0
    %1346 = vmatpush1.msra.mxu0 %v876
    %1347 = vmatprep.subr.mxu0 0.0
    %1348 = vmatpush1.msra.mxu0 %v877
    %1349 = vmatprep.subr.mxu0 0.0
    %1350 = vmatpush1.msra.mxu0 %v878
    %1351 = vmatprep.subr.mxu0 0.0
    %1352 = vmatpush1.msra.mxu0 %v879
    %1353 = vmatprep.subr.mxu0 0.0
    %1354 = vmatpush1.msra.mxu0 %v880
    %1355 = vmatprep.subr.mxu0 0.0
    %1356 = vmatpush1.msra.mxu0 %v881
    %1357 = vmatprep.subr.mxu0 0.0
    %1358 = vmatpush1.msra.mxu0 %v882
    %1359 = vmatprep.subr.mxu0 0.0
    %1360 = vmatpush1.msra.mxu0 %v883
    %1361 = vmatprep.subr.mxu0 0.0
    %1362 = vmatpush1.msra.mxu0 %v884
    %1363 = vmatprep.subr.mxu0 0.0
    %1364 = vmatpush1.msra.mxu0 %v885
    %1365 = vmatprep.subr.mxu0 0.0
    %1366 = vmatpush1.msra.mxu0 %v886
    %1367 = vmatprep.mubr.f32.mxu0 %v672
    %1368 = vmatmul.mubr.f32.gmra.mrb[0].mxu0 %v671
    %v1369 = vpop.f32.mrb[0].mxu0
    %v1370 = vadd.f32 %v1290, %v1369
    %v1371 = vpop.f32.mrb[0].mxu0
    %1372 = vmatprep.mubr.f32.mxu0 %v720
    %1373 = vmatmul.mubr.f32.gmra.mrb[0].mxu0 %v719
    %v1374 = vpop.f32.mrb[0].mxu0
    %v1375 = vadd.f32 %v1295, %v1374
    %v1376 = vpop.f32.mrb[0].mxu0
    %1377 = vmatprep.mubr.f32.mxu0 %v460
    %1378 = vmatmul.mubr.f32.gmra.mrb[0].mxu0 %v377
    %v1379 = vpop.f32.mrb[0].mxu0
    %v1380 = vadd.f32 %v1300, %v1379
    %v1381 = vpop.f32.mrb[0].mxu0
    %1382 = vdwg.mxu0
    %1383 = vmatprep.subr.mxu0 0.0
    %1384 = vmatpush1.msra.mxu0 %v887
    %1385 = vmatprep.subr.mxu0 0.0
    %1386 = vmatpush1.msra.mxu0 %v888
    %1387 = vmatprep.subr.mxu0 0.0
    %1388 = vmatpush1.msra.mxu0 %v889
    %1389 = vmatprep.subr.mxu0 0.0
    %1390 = vmatpush1.msra.mxu0 %v890
    %1391 = vmatprep.subr.mxu0 0.0
    %1392 = vmatpush1.msra.mxu0 %v891
    %1393 = vmatprep.subr.mxu0 0.0
    %1394 = vmatpush1.msra.mxu0 %v892
    %1395 = vmatprep.subr.mxu0 0.0
    %1396 = vmatpush1.msra.mxu0 %v893
    %1397 = vmatprep.subr.mxu0 0.0
    %1398 = vmatpush1.msra.mxu0 %v894
    %1399 = vmatprep.subr.mxu0 0.0
    %1400 = vmatpush1.msra.mxu0 %v895
    %1401 = vmatprep.subr.mxu0 0.0
    %1402 = vmatpush1.msra.mxu0 %v896
    %1403 = vmatprep.subr.mxu0 0.0
    %1404 = vmatpush1.msra.mxu0 %v897
    %1405 = vmatprep.subr.mxu0 0.0
    %1406 = vmatpush1.msra.mxu0 %v898
    %1407 = vmatprep.subr.mxu0 0.0
    %1408 = vmatpush1.msra.mxu0 %v899
    %1409 = vmatprep.subr.mxu0 0.0
    %1410 = vmatpush1.msra.mxu0 %v900
    %1411 = vmatprep.subr.mxu0 0.0
    %1412 = vmatpush1.msra.mxu0 %v901
    %1413 = vmatprep.subr.mxu0 0.0
    %1414 = vmatpush1.msra.mxu0 %v902
    %1415 = vmatprep.subr.mxu0 0.0
    %1416 = vmatpush1.msra.mxu0 %v903
    %1417 = vmatprep.subr.mxu0 0.0
    %1418 = vmatpush1.msra.mxu0 %v904
    %1419 = vmatprep.subr.mxu0 0.0
    %1420 = vmatpush1.msra.mxu0 %v905
    %1421 = vmatprep.subr.mxu0 0.0
    %1422 = vmatpush1.msra.mxu0 %v906
    %1423 = vmatprep.subr.mxu0 0.0
    %1424 = vmatpush1.msra.mxu0 %v907
    %1425 = vmatprep.subr.mxu0 0.0
    %1426 = vmatpush1.msra.mxu0 %v908
    %1427 = vmatprep.subr.mxu0 0.0
    %1428 = vmatpush1.msra.mxu0 %v909
    %1429 = vmatprep.subr.mxu0 0.0
    %1430 = vmatpush1.msra.mxu0 %v910
    %1431 = vmatprep.subr.mxu0 0.0
    %1432 = vmatpush1.msra.mxu0 %v911
    %1433 = vmatprep.subr.mxu0 0.0
    %1434 = vmatpush1.msra.mxu0 %v912
    %1435 = vmatprep.subr.mxu0 0.0
    %1436 = vmatpush1.msra.mxu0 %v913
    %1437 = vmatprep.subr.mxu0 0.0
    %1438 = vmatpush1.msra.mxu0 %v914
    %1439 = vmatprep.subr.mxu0 0.0
    %1440 = vmatpush1.msra.mxu0 %v915
    %1441 = vmatprep.subr.mxu0 0.0
    %1442 = vmatpush1.msra.mxu0 %v916
    %1443 = vmatprep.subr.mxu0 0.0
    %1444 = vmatpush1.msra.mxu0 %v917
    %1445 = vmatprep.subr.mxu0 0.0
    %1446 = vmatpush1.msra.mxu0 %v918
    %1447 = vmatprep.mubr.f32.mxu0 %v674
    %1448 = vmatmul.mubr.f32.gmra.mrb[0].mxu0 %v673
    %v1449 = vpop.f32.mrb[0].mxu0
    %v1450 = vadd.f32 %v1370, %v1449
    %v1451 = vpop.f32.mrb[0].mxu0
    %1452 = vmatprep.mubr.f32.mxu0 %v722
    %1453 = vmatmul.mubr.f32.gmra.mrb[0].mxu0 %v721
    %v1454 = vpop.f32.mrb[0].mxu0
    %v1455 = vadd.f32 %v1375, %v1454
    %v1456 = vpop.f32.mrb[0].mxu0
    %1457 = vmatprep.mubr.f32.mxu0 %v450
    %1458 = vmatmul.mubr.f32.gmra.mrb[0].mxu0 %v449
    %v1459 = vpop.f32.mrb[0].mxu0
    %v1460 = vadd.f32 %v1380, %v1459
    %v1461 = vpop.f32.mrb[0].mxu0
    %1462 = vdwg.mxu0
    %1463 = vmatprep.subr.mxu0 0.0
    %1464 = vmatpush1.msra.mxu0 %v919
    %1465 = vmatprep.subr.mxu0 0.0
    %1466 = vmatpush1.msra.mxu0 %v920
    %1467 = vmatprep.subr.mxu0 0.0
    %1468 = vmatpush1.msra.mxu0 %v921
    %1469 = vmatprep.subr.mxu0 0.0
    %1470 = vmatpush1.msra.mxu0 %v922
    %1471 = vmatprep.subr.mxu0 0.0
    %1472 = vmatpush1.msra.mxu0 %v923
    %1473 = vmatprep.subr.mxu0 0.0
    %1474 = vmatpush1.msra.mxu0 %v924
    %1475 = vmatprep.subr.mxu0 0.0
    %1476 = vmatpush1.msra.mxu0 %v925
    %1477 = vmatprep.subr.mxu0 0.0
    %1478 = vmatpush1.msra.mxu0 %v926
    %1479 = vmatprep.subr.mxu0 0.0
    %1480 = vmatpush1.msra.mxu0 %v927
    %1481 = vmatprep.subr.mxu0 0.0
    %1482 = vmatpush1.msra.mxu0 %v928
    %1483 = vmatprep.subr.mxu0 0.0
    %1484 = vmatpush1.msra.mxu0 %v929
    %1485 = vmatprep.subr.mxu0 0.0
    %1486 = vmatpush1.msra.mxu0 %v930
    %1487 = vmatprep.subr.mxu0 0.0
    %1488 = vmatpush1.msra.mxu0 %v931
    %1489 = vmatprep.subr.mxu0 0.0
    %1490 = vmatpush1.msra.mxu0 %v932
    %1491 = vmatprep.subr.mxu0 0.0
    %1492 = vmatpush1.msra.mxu0 %v933
    %1493 = vmatprep.subr.mxu0 0.0
    %1494 = vmatpush1.msra.mxu0 %v934
    %1495 = vmatprep.subr.mxu0 0.0
    %1496 = vmatpush1.msra.mxu0 %v935
    %1497 = vmatprep.subr.mxu0 0.0
    %1498 = vmatpush1.msra.mxu0 %v936
    %1499 = vmatprep.subr.mxu0 0.0
    %1500 = vmatpush1.msra.mxu0 %v937
    %1501 = vmatprep.subr.mxu0 0.0
    %1502 = vmatpush1.msra.mxu0 %v938
    %1503 = vmatprep.subr.mxu0 0.0
    %1504 = vmatpush1.msra.mxu0 %v939
    %1505 = vmatprep.subr.mxu0 0.0
    %1506 = vmatpush1.msra.mxu0 %v940
    %1507 = vmatprep.subr.mxu0 0.0
    %1508 = vmatpush1.msra.mxu0 %v941
    %1509 = vmatprep.subr.mxu0 0.0
    %1510 = vmatpush1.msra.mxu0 %v942
    %1511 = vmatprep.subr.mxu0 0.0
    %1512 = vmatpush1.msra.mxu0 %v943
    %1513 = vmatprep.subr.mxu0 0.0
    %1514 = vmatpush1.msra.mxu0 %v944
    %1515 = vmatprep.subr.mxu0 0.0
    %1516 = vmatpush1.msra.mxu0 %v945
    %1517 = vmatprep.subr.mxu0 0.0
    %1518 = vmatpush1.msra.mxu0 %v946
    %1519 = vmatprep.subr.mxu0 0.0
    %1520 = vmatpush1.msra.mxu0 %v947
    %1521 = vmatprep.subr.mxu0 0.0
    %1522 = vmatpush1.msra.mxu0 %v948
    %1523 = vmatprep.subr.mxu0 0.0
    %1524 = vmatpush1.msra.mxu0 %v949
    %1525 = vmatprep.subr.mxu0 0.0
    %1526 = vmatpush1.msra.mxu0 %v950
    %1527 = vmatprep.mubr.f32.mxu0 %v676
    %1528 = vmatmul.mubr.f32.gmra.mrb[0].mxu0 %v675
    %v1529 = vpop.f32.mrb[0].mxu0
    %v1530 = vadd.f32 %v1450, %v1529
    %v1531 = vpop.f32.mrb[0].mxu0
    %1532 = vmatprep.mubr.f32.mxu0 %v724
    %1533 = vmatmul.mubr.f32.gmra.mrb[0].mxu0 %v723
    %v1534 = vpop.f32.mrb[0].mxu0
    %v1535 = vadd.f32 %v1455, %v1534
    %v1536 = vpop.f32.mrb[0].mxu0
    %1537 = vmatprep.mubr.f32.mxu0 %v464
    %1538 = vmatmul.mubr.f32.gmra.mrb[0].mxu0 %v379
    %v1539 = vpop.f32.mrb[0].mxu0
    %v1540 = vadd.f32 %v1460, %v1539
    %v1541 = vpop.f32.mrb[0].mxu0
    %1542 = vdwg.mxu0
    %1543 = vmatprep.subr.mxu0 0.0
    %1544 = vmatpush1.msra.mxu0 %v951
    %1545 = vmatprep.subr.mxu0 0.0
    %1546 = vmatpush1.msra.mxu0 %v952
    %1547 = vmatprep.subr.mxu0 0.0
    %1548 = vmatpush1.msra.mxu0 %v953
    %1549 = vmatprep.subr.mxu0 0.0
    %1550 = vmatpush1.msra.mxu0 %v954
    %1551 = vmatprep.subr.mxu0 0.0
    %1552 = vmatpush1.msra.mxu0 %v955
    %1553 = vmatprep.subr.mxu0 0.0
    %1554 = vmatpush1.msra.mxu0 %v956
    %1555 = vmatprep.subr.mxu0 0.0
    %1556 = vmatpush1.msra.mxu0 %v957
    %1557 = vmatprep.subr.mxu0 0.0
    %1558 = vmatpush1.msra.mxu0 %v958
    %1559 = vmatprep.subr.mxu0 0.0
    %1560 = vmatpush1.msra.mxu0 %v959
    %1561 = vmatprep.subr.mxu0 0.0
    %1562 = vmatpush1.msra.mxu0 %v960
    %1563 = vmatprep.subr.mxu0 0.0
    %1564 = vmatpush1.msra.mxu0 %v961
    %1565 = vmatprep.subr.mxu0 0.0
    %1566 = vmatpush1.msra.mxu0 %v962
    %1567 = vmatprep.subr.mxu0 0.0
    %1568 = vmatpush1.msra.mxu0 %v963
    %1569 = vmatprep.subr.mxu0 0.0
    %1570 = vmatpush1.msra.mxu0 %v964
    %1571 = vmatprep.subr.mxu0 0.0
    %1572 = vmatpush1.msra.mxu0 %v965
    %1573 = vmatprep.subr.mxu0 0.0
    %1574 = vmatpush1.msra.mxu0 %v966
    %1575 = vmatprep.subr.mxu0 0.0
    %1576 = vmatpush1.msra.mxu0 %v967
    %1577 = vmatprep.subr.mxu0 0.0
    %1578 = vmatpush1.msra.mxu0 %v968
    %1579 = vmatprep.subr.mxu0 0.0
    %1580 = vmatpush1.msra.mxu0 %v969
    %1581 = vmatprep.subr.mxu0 0.0
    %1582 = vmatpush1.msra.mxu0 %v970
    %1583 = vmatprep.subr.mxu0 0.0
    %1584 = vmatpush1.msra.mxu0 %v971
    %1585 = vmatprep.subr.mxu0 0.0
    %1586 = vmatpush1.msra.mxu0 %v972
    %1587 = vmatprep.subr.mxu0 0.0
    %1588 = vmatpush1.msra.mxu0 %v973
    %1589 = vmatprep.subr.mxu0 0.0
    %1590 = vmatpush1.msra.mxu0 %v974
    %1591 = vmatprep.subr.mxu0 0.0
    %1592 = vmatpush1.msra.mxu0 %v975
    %1593 = vmatprep.subr.mxu0 0.0
    %1594 = vmatpush1.msra.mxu0 %v976
    %1595 = vmatprep.subr.mxu0 0.0
    %1596 = vmatpush1.msra.mxu0 %v977
    %1597 = vmatprep.subr.mxu0 0.0
    %1598 = vmatpush1.msra.mxu0 %v978
    %1599 = vmatprep.subr.mxu0 0.0
    %1600 = vmatpush1.msra.mxu0 %v979
    %1601 = vmatprep.subr.mxu0 0.0
    %1602 = vmatpush1.msra.mxu0 %v980
    %1603 = vmatprep.subr.mxu0 0.0
    %1604 = vmatpush1.msra.mxu0 %v981
    %1605 = vmatprep.subr.mxu0 0.0
    %1606 = vmatpush1.msra.mxu0 %v982
    %1607 = vmatprep.mubr.f32.mxu0 %v678
    %1608 = vmatmul.mubr.f32.gmra.mrb[0].mxu0 %v677
    %v1609 = vpop.f32.mrb[0].mxu0
    %v1610 = vadd.f32 %v1530, %v1609
    %v1611 = vpop.f32.mrb[0].mxu0
    %1612 = vmatprep.mubr.f32.mxu0 %v726
    %1613 = vmatmul.mubr.f32.gmra.mrb[0].mxu0 %v725
    %v1614 = vpop.f32.mrb[0].mxu0
    %v1615 = vadd.f32 %v1535, %v1614
    %v1616 = vpop.f32.mrb[0].mxu0
    %1617 = vmatprep.mubr.f32.mxu0 %v453
    %1618 = vmatmul.mubr.f32.gmra.mrb[0].mxu0 %v452
    %v1619 = vpop.f32.mrb[0].mxu0
    %v1620 = vadd.f32 %v1540, %v1619
    %v1621 = vpop.f32.mrb[0].mxu0
    %1622 = vdwg.mxu0
    %v1623 = vadd.f32 %v1610, %v1615
    %v1624 = vsel %vm628, %v1620, 0.0
    %v1625 = vadd.f32 %v1623, %v1624
    %v1626 = vrot.slane %v1625, 4
    %v1627 = vadd.f32 %v1625, %v1626
    %v1628 = vrot.slane %v1627, 2
    %v1629 = vadd.f32 %v1627, %v1628
    %v1630 = vrot.slane %v1629, 1
    %v1631 = vadd.f32 %v1629, %v1630
    %v1632 = vmul.f32 %v1631, 0.055555556
    %v1633 = vmul.f32 %v1610, %v1610
    %v1634 = vmul.f32 %v1615, %v1615
    %v1635 = vmul.f32 %v1620, %v1620
    %v1636 = vadd.f32 %v1633, %v1634
    %v1637 = vsel %vm628, %v1635, 0.0
    %v1638 = vadd.f32 %v1636, %v1637
    %v1639 = vrot.slane %v1638, 4
    %v1640 = vadd.f32 %v1638, %v1639
    %v1641 = vrot.slane %v1640, 2
    %v1642 = vadd.f32 %v1640, %v1641
    %v1643 = vrot.slane %v1642, 1
    %v1644 = vadd.f32 %v1642, %v1643
    %v1645 = vmul.f32 %v1644, 0.055555556
    %v1646 = vmul.f32 %v1632, %v1632
    %v1647 = vsub.f32 %v1645, %v1646
    %v1648 = vld [vmem:[%s5] sm:$0x1]
    %v1649 = vadd.f32 %v1647, 1e-05
    %v1650 = vrsqrt.pop %v1649
    %v1651 = vmul.f32 %v1648, %v1650
    %v1652 = vld [vmem:[%s6] sm:$0x1]
    %v1653 = vmul.f32 %v1632, %v1651
    %v1654 = vsub.f32 %v1652, %v1653
    %v1656 = vlaneseq
    %v1657 = vshrl.u32 %v1656, 7
    %v1658 = vsub.s32 0, %v1657
    %v1659 = vrot.slane %v1651, %v1658
    %v1661 = vmul.f32 %v1610, %v1659
    %v1662 = vmul.f32 %v1615, %v1659
    %v1663 = vmul.f32 %v1620, %v1659
    %v1665 = vlaneseq
    %v1666 = vshrl.u32 %v1665, 7
    %v1667 = vsub.s32 0, %v1666
    %v1668 = vrot.slane %v1654, %v1667
    %v1670 = vadd.f32 %v1661, %v1668
    %v1671 = vadd.f32 %v1662, %v1668
    %v1672 = vadd.f32 %v1663, %v1668
    %v1673 = vmax.f32 %v1670, 0.0
    %v1674 = vmax.f32 %v1671, 0.0
    %v1675 = vmax.f32 %v1672, 0.0
    %v1677 = vrot.slane %v1673, 2
    %v1679 = vrot.slane %v1673, 4
    %v1681 = vrot.slane %v1673, 6
    %v1684 = vrot.slane %v1674, 2
    %v1686 = vrot.slane %v1674, 4
    %v1688 = vrot.slane %v1674, 6
    %v1690 = vld [vmem:[%s7] sm:$0xff]
    %v1691 = vld [vmem:[%s7 + $0x8] sm:$0xff]
    %v1692 = vld [vmem:[%s7 + $0x10] sm:$0xff]
    %v1693 = vld [vmem:[%s7 + $0x18] sm:$0xff]
    %v1694 = vld [vmem:[%s7 + $0x20] sm:$0xff]
    %v1695 = vld [vmem:[%s7 + $0x28] sm:$0xff]
    %v1696 = vld [vmem:[%s7 + $0x30] sm:$0xff]
    %v1697 = vld [vmem:[%s7 + $0x38] sm:$0xff]
    %v1698 = vld [vmem:[%s7 + $0x40] sm:$0xff]
    %v1699 = vld [vmem:[%s7 + $0x48] sm:$0xff]
    %v1700 = vld [vmem:[%s7 + $0x50] sm:$0xff]
    %v1701 = vld [vmem:[%s7 + $0x58] sm:$0xff]
    %v1702 = vld [vmem:[%s7 + $0x60] sm:$0xff]
    %v1703 = vld [vmem:[%s7 + $0x68] sm:$0xff]
    %v1704 = vld [vmem:[%s7 + $0x70] sm:$0xff]
    %v1705 = vld [vmem:[%s7 + $0x78] sm:$0xff]
    %v1706 = vld [vmem:[%s7 + $0x80] sm:$0xff]
    %v1707 = vld [vmem:[%s7 + $0x88] sm:$0xff]
    %v1708 = vld [vmem:[%s7 + $0x90] sm:$0xff]
    %v1709 = vld [vmem:[%s7 + $0x98] sm:$0xff]
    %v1710 = vld [vmem:[%s7 + $0xa0] sm:$0xff]
    %v1711 = vld [vmem:[%s7 + $0xa8] sm:$0xff]
    %v1712 = vld [vmem:[%s7 + $0xb0] sm:$0xff]
    %v1713 = vld [vmem:[%s7 + $0xb8] sm:$0xff]
    %v1714 = vld [vmem:[%s7 + $0xc0] sm:$0xff]
    %v1715 = vld [vmem:[%s7 + $0xc8] sm:$0xff]
    %v1716 = vld [vmem:[%s7 + $0xd0] sm:$0xff]
    %v1717 = vld [vmem:[%s7 + $0xd8] sm:$0xff]
    %v1718 = vld [vmem:[%s7 + $0xe0] sm:$0xff]
    %v1719 = vld [vmem:[%s7 + $0xe8] sm:$0xff]
    %v1720 = vld [vmem:[%s7 + $0xf0] sm:$0xff]
    %v1721 = vld [vmem:[%s7 + $0xf8] sm:$0xff]
    %v1722 = vld [vmem:[%s7 + $0x100] sm:$0xff]
    %v1723 = vld [vmem:[%s7 + $0x108] sm:$0xff]
    %v1724 = vld [vmem:[%s7 + $0x110] sm:$0xff]
    %v1725 = vld [vmem:[%s7 + $0x118] sm:$0xff]
    %v1726 = vld [vmem:[%s7 + $0x120] sm:$0xff]
    %v1727 = vld [vmem:[%s7 + $0x128] sm:$0xff]
    %v1728 = vld [vmem:[%s7 + $0x130] sm:$0xff]
    %v1729 = vld [vmem:[%s7 + $0x138] sm:$0xff]
    %v1730 = vld [vmem:[%s7 + $0x140] sm:$0xff]
    %v1731 = vld [vmem:[%s7 + $0x148] sm:$0xff]
    %v1732 = vld [vmem:[%s7 + $0x150] sm:$0xff]
    %v1733 = vld [vmem:[%s7 + $0x158] sm:$0xff]
    %v1734 = vld [vmem:[%s7 + $0x160] sm:$0xff]
    %v1735 = vld [vmem:[%s7 + $0x168] sm:$0xff]
    %v1736 = vld [vmem:[%s7 + $0x170] sm:$0xff]
    %v1737 = vld [vmem:[%s7 + $0x178] sm:$0xff]
    %v1738 = vld [vmem:[%s7 + $0x180] sm:$0xff]
    %v1739 = vld [vmem:[%s7 + $0x188] sm:$0xff]
    %v1740 = vld [vmem:[%s7 + $0x190] sm:$0xff]
    %v1741 = vld [vmem:[%s7 + $0x198] sm:$0xff]
    %v1742 = vld [vmem:[%s7 + $0x1a0] sm:$0xff]
    %v1743 = vld [vmem:[%s7 + $0x1a8] sm:$0xff]
    %v1744 = vld [vmem:[%s7 + $0x1b0] sm:$0xff]
    %v1745 = vld [vmem:[%s7 + $0x1b8] sm:$0xff]
    %v1746 = vld [vmem:[%s7 + $0x1c0] sm:$0xff]
    %v1747 = vld [vmem:[%s7 + $0x1c8] sm:$0xff]
    %v1748 = vld [vmem:[%s7 + $0x1d0] sm:$0xff]
    %v1749 = vld [vmem:[%s7 + $0x1d8] sm:$0xff]
    %v1750 = vld [vmem:[%s7 + $0x1e0] sm:$0xff]
    %v1751 = vld [vmem:[%s7 + $0x1e8] sm:$0xff]
    %v1752 = vld [vmem:[%s7 + $0x1f0] sm:$0xff]
    %v1753 = vld [vmem:[%s7 + $0x1f8] sm:$0xff]
    %v1754 = vld [vmem:[%s7 + $0x200] sm:$0xff]
    %v1755 = vld [vmem:[%s7 + $0x208] sm:$0xff]
    %v1756 = vld [vmem:[%s7 + $0x210] sm:$0xff]
    %v1757 = vld [vmem:[%s7 + $0x218] sm:$0xff]
    %v1758 = vld [vmem:[%s7 + $0x220] sm:$0xff]
    %v1759 = vld [vmem:[%s7 + $0x228] sm:$0xff]
    %v1760 = vld [vmem:[%s7 + $0x230] sm:$0xff]
    %v1761 = vld [vmem:[%s7 + $0x238] sm:$0xff]
    %v1762 = vld [vmem:[%s7 + $0x240] sm:$0xff]
    %v1763 = vld [vmem:[%s7 + $0x248] sm:$0xff]
    %v1764 = vld [vmem:[%s7 + $0x250] sm:$0xff]
    %v1765 = vld [vmem:[%s7 + $0x258] sm:$0xff]
    %v1766 = vld [vmem:[%s7 + $0x260] sm:$0xff]
    %v1767 = vld [vmem:[%s7 + $0x268] sm:$0xff]
    %v1768 = vld [vmem:[%s7 + $0x270] sm:$0xff]
    %v1769 = vld [vmem:[%s7 + $0x278] sm:$0xff]
    %v1770 = vld [vmem:[%s7 + $0x280] sm:$0xff]
    %v1771 = vld [vmem:[%s7 + $0x288] sm:$0xff]
    %v1772 = vld [vmem:[%s7 + $0x290] sm:$0xff]
    %v1773 = vld [vmem:[%s7 + $0x298] sm:$0xff]
    %v1774 = vld [vmem:[%s7 + $0x2a0] sm:$0xff]
    %v1775 = vld [vmem:[%s7 + $0x2a8] sm:$0xff]
    %v1776 = vld [vmem:[%s7 + $0x2b0] sm:$0xff]
    %v1777 = vld [vmem:[%s7 + $0x2b8] sm:$0xff]
    %v1778 = vld [vmem:[%s7 + $0x2c0] sm:$0xff]
    %v1779 = vld [vmem:[%s7 + $0x2c8] sm:$0xff]
    %v1780 = vld [vmem:[%s7 + $0x2d0] sm:$0xff]
    %v1781 = vld [vmem:[%s7 + $0x2d8] sm:$0xff]
    %v1782 = vld [vmem:[%s7 + $0x2e0] sm:$0xff]
    %v1783 = vld [vmem:[%s7 + $0x2e8] sm:$0xff]
    %v1784 = vld [vmem:[%s7 + $0x2f0] sm:$0xff]
    %v1785 = vld [vmem:[%s7 + $0x2f8] sm:$0xff]
    %v1786 = vld [vmem:[%s7 + $0x300] sm:$0xff]
    %v1787 = vld [vmem:[%s7 + $0x308] sm:$0xff]
    %v1788 = vld [vmem:[%s7 + $0x310] sm:$0xff]
    %v1789 = vld [vmem:[%s7 + $0x318] sm:$0xff]
    %v1790 = vld [vmem:[%s7 + $0x320] sm:$0xff]
    %v1791 = vld [vmem:[%s7 + $0x328] sm:$0xff]
    %v1792 = vld [vmem:[%s7 + $0x330] sm:$0xff]
    %v1793 = vld [vmem:[%s7 + $0x338] sm:$0xff]
    %v1794 = vld [vmem:[%s7 + $0x340] sm:$0xff]
    %v1795 = vld [vmem:[%s7 + $0x348] sm:$0xff]
    %v1796 = vld [vmem:[%s7 + $0x350] sm:$0xff]
    %v1797 = vld [vmem:[%s7 + $0x358] sm:$0xff]
    %v1798 = vld [vmem:[%s7 + $0x360] sm:$0xff]
    %v1799 = vld [vmem:[%s7 + $0x368] sm:$0xff]
    %v1800 = vld [vmem:[%s7 + $0x370] sm:$0xff]
    %v1801 = vld [vmem:[%s7 + $0x378] sm:$0xff]
    %v1802 = vld [vmem:[%s7 + $0x380] sm:$0xff]
    %v1803 = vld [vmem:[%s7 + $0x388] sm:$0xff]
    %v1804 = vld [vmem:[%s7 + $0x390] sm:$0xff]
    %v1805 = vld [vmem:[%s7 + $0x398] sm:$0xff]
    %v1806 = vld [vmem:[%s7 + $0x3a0] sm:$0xff]
    %v1807 = vld [vmem:[%s7 + $0x3a8] sm:$0xff]
    %v1808 = vld [vmem:[%s7 + $0x3b0] sm:$0xff]
    %v1809 = vld [vmem:[%s7 + $0x3b8] sm:$0xff]
    %v1810 = vld [vmem:[%s7 + $0x3c0] sm:$0xff]
    %v1811 = vld [vmem:[%s7 + $0x3c8] sm:$0xff]
    %v1812 = vld [vmem:[%s7 + $0x3d0] sm:$0xff]
    %v1813 = vld [vmem:[%s7 + $0x3d8] sm:$0xff]
    %v1814 = vld [vmem:[%s7 + $0x3e0] sm:$0xff]
    %v1815 = vld [vmem:[%s7 + $0x3e8] sm:$0xff]
    %v1816 = vld [vmem:[%s7 + $0x3f0] sm:$0xff]
    %v1817 = vld [vmem:[%s7 + $0x3f8] sm:$0xff]
    %v1818 = vld [vmem:[%s7 + $0x400] sm:$0xff]
    %v1819 = vld [vmem:[%s7 + $0x408] sm:$0xff]
    %v1820 = vld [vmem:[%s7 + $0x410] sm:$0xff]
    %v1821 = vld [vmem:[%s7 + $0x418] sm:$0xff]
    %v1822 = vld [vmem:[%s7 + $0x420] sm:$0xff]
    %v1823 = vld [vmem:[%s7 + $0x428] sm:$0xff]
    %v1824 = vld [vmem:[%s7 + $0x430] sm:$0xff]
    %v1825 = vld [vmem:[%s7 + $0x438] sm:$0xff]
    %v1826 = vld [vmem:[%s7 + $0x440] sm:$0xff]
    %v1827 = vld [vmem:[%s7 + $0x448] sm:$0xff]
    %v1828 = vld [vmem:[%s7 + $0x450] sm:$0xff]
    %v1829 = vld [vmem:[%s7 + $0x458] sm:$0xff]
    %v1830 = vld [vmem:[%s7 + $0x460] sm:$0xff]
    %v1831 = vld [vmem:[%s7 + $0x468] sm:$0xff]
    %v1832 = vld [vmem:[%s7 + $0x470] sm:$0xff]
    %v1833 = vld [vmem:[%s7 + $0x478] sm:$0xff]
    %1834 = vmatprep.subr.mxu0 0.0
    %1835 = vmatpush1.msra.mxu0 %v1690
    %1836 = vmatprep.subr.mxu0 0.0
    %1837 = vmatpush1.msra.mxu0 %v1691
    %1838 = vmatprep.subr.mxu0 0.0
    %1839 = vmatpush1.msra.mxu0 %v1692
    %1840 = vmatprep.subr.mxu0 0.0
    %1841 = vmatpush1.msra.mxu0 %v1693
    %1842 = vmatprep.subr.mxu0 0.0
    %1843 = vmatpush1.msra.mxu0 %v1694
    %1844 = vmatprep.subr.mxu0 0.0
    %1845 = vmatpush1.msra.mxu0 %v1695
    %1846 = vmatprep.subr.mxu0 0.0
    %1847 = vmatpush1.msra.mxu0 %v1696
    %1848 = vmatprep.subr.mxu0 0.0
    %1849 = vmatpush1.msra.mxu0 %v1697
    %1850 = vmatprep.subr.mxu0 0.0
    %1851 = vmatpush1.msra.mxu0 %v1698
    %1852 = vmatprep.subr.mxu0 0.0
    %1853 = vmatpush1.msra.mxu0 %v1699
    %1854 = vmatprep.subr.mxu0 0.0
    %1855 = vmatpush1.msra.mxu0 %v1700
    %1856 = vmatprep.subr.mxu0 0.0
    %1857 = vmatpush1.msra.mxu0 %v1701
    %1858 = vmatprep.subr.mxu0 0.0
    %1859 = vmatpush1.msra.mxu0 %v1702
    %1860 = vmatprep.subr.mxu0 0.0
    %1861 = vmatpush1.msra.mxu0 %v1703
    %1862 = vmatprep.subr.mxu0 0.0
    %1863 = vmatpush1.msra.mxu0 %v1704
    %1864 = vmatprep.subr.mxu0 0.0
    %1865 = vmatpush1.msra.mxu0 %v1705
    %1866 = vmatprep.subr.mxu0 0.0
    %1867 = vmatpush1.msra.mxu0 %v1706
    %1868 = vmatprep.subr.mxu0 0.0
    %1869 = vmatpush1.msra.mxu0 %v1707
    %1870 = vmatprep.subr.mxu0 0.0
    %1871 = vmatpush1.msra.mxu0 %v1708
    %1872 = vmatprep.subr.mxu0 0.0
    %1873 = vmatpush1.msra.mxu0 %v1709
    %1874 = vmatprep.subr.mxu0 0.0
    %1875 = vmatpush1.msra.mxu0 %v1710
    %1876 = vmatprep.subr.mxu0 0.0
    %1877 = vmatpush1.msra.mxu0 %v1711
    %1878 = vmatprep.subr.mxu0 0.0
    %1879 = vmatpush1.msra.mxu0 %v1712
    %1880 = vmatprep.subr.mxu0 0.0
    %1881 = vmatpush1.msra.mxu0 %v1713
    %1882 = vmatprep.subr.mxu0 0.0
    %1883 = vmatpush1.msra.mxu0 %v1714
    %1884 = vmatprep.subr.mxu0 0.0
    %1885 = vmatpush1.msra.mxu0 %v1715
    %1886 = vmatprep.subr.mxu0 0.0
    %1887 = vmatpush1.msra.mxu0 %v1716
    %1888 = vmatprep.subr.mxu0 0.0
    %1889 = vmatpush1.msra.mxu0 %v1717
    %1890 = vmatprep.subr.mxu0 0.0
    %1891 = vmatpush1.msra.mxu0 %v1718
    %1892 = vmatprep.subr.mxu0 0.0
    %1893 = vmatpush1.msra.mxu0 %v1719
    %1894 = vmatprep.subr.mxu0 0.0
    %1895 = vmatpush1.msra.mxu0 %v1720
    %1896 = vmatprep.subr.mxu0 0.0
    %1897 = vmatpush1.msra.mxu0 %v1721
    %1898 = vmatprep.mubr.f32.mxu0 %v1677
    %1899 = vmatmul.mubr.f32.gmra.mrb[0].mxu0 %v1673
    %v1900 = vpop.f32.mrb[0].mxu0
    %v1901 = vadd.f32 0.0, %v1900
    %v1902 = vpop.f32.mrb[0].mxu0
    %1903 = vdwg.mxu0
    %1904 = vmatprep.subr.mxu0 0.0
    %1905 = vmatpush1.msra.mxu0 %v1722
    %1906 = vmatprep.subr.mxu0 0.0
    %1907 = vmatpush1.msra.mxu0 %v1723
    %1908 = vmatprep.subr.mxu0 0.0
    %1909 = vmatpush1.msra.mxu0 %v1724
    %1910 = vmatprep.subr.mxu0 0.0
    %1911 = vmatpush1.msra.mxu0 %v1725
    %1912 = vmatprep.subr.mxu0 0.0
    %1913 = vmatpush1.msra.mxu0 %v1726
    %1914 = vmatprep.subr.mxu0 0.0
    %1915 = vmatpush1.msra.mxu0 %v1727
    %1916 = vmatprep.subr.mxu0 0.0
    %1917 = vmatpush1.msra.mxu0 %v1728
    %1918 = vmatprep.subr.mxu0 0.0
    %1919 = vmatpush1.msra.mxu0 %v1729
    %1920 = vmatprep.subr.mxu0 0.0
    %1921 = vmatpush1.msra.mxu0 %v1730
    %1922 = vmatprep.subr.mxu0 0.0
    %1923 = vmatpush1.msra.mxu0 %v1731
    %1924 = vmatprep.subr.mxu0 0.0
    %1925 = vmatpush1.msra.mxu0 %v1732
    %1926 = vmatprep.subr.mxu0 0.0
    %1927 = vmatpush1.msra.mxu0 %v1733
    %1928 = vmatprep.subr.mxu0 0.0
    %1929 = vmatpush1.msra.mxu0 %v1734
    %1930 = vmatprep.subr.mxu0 0.0
    %1931 = vmatpush1.msra.mxu0 %v1735
    %1932 = vmatprep.subr.mxu0 0.0
    %1933 = vmatpush1.msra.mxu0 %v1736
    %1934 = vmatprep.subr.mxu0 0.0
    %1935 = vmatpush1.msra.mxu0 %v1737
    %1936 = vmatprep.subr.mxu0 0.0
    %1937 = vmatpush1.msra.mxu0 %v1738
    %1938 = vmatprep.subr.mxu0 0.0
    %1939 = vmatpush1.msra.mxu0 %v1739
    %1940 = vmatprep.subr.mxu0 0.0
    %1941 = vmatpush1.msra.mxu0 %v1740
    %1942 = vmatprep.subr.mxu0 0.0
    %1943 = vmatpush1.msra.mxu0 %v1741
    %1944 = vmatprep.subr.mxu0 0.0
    %1945 = vmatpush1.msra.mxu0 %v1742
    %1946 = vmatprep.subr.mxu0 0.0
    %1947 = vmatpush1.msra.mxu0 %v1743
    %1948 = vmatprep.subr.mxu0 0.0
    %1949 = vmatpush1.msra.mxu0 %v1744
    %1950 = vmatprep.subr.mxu0 0.0
    %1951 = vmatpush1.msra.mxu0 %v1745
    %1952 = vmatprep.subr.mxu0 0.0
    %1953 = vmatpush1.msra.mxu0 %v1746
    %1954 = vmatprep.subr.mxu0 0.0
    %1955 = vmatpush1.msra.mxu0 %v1747
    %1956 = vmatprep.subr.mxu0 0.0
    %1957 = vmatpush1.msra.mxu0 %v1748
    %1958 = vmatprep.subr.mxu0 0.0
    %1959 = vmatpush1.msra.mxu0 %v1749
    %1960 = vmatprep.subr.mxu0 0.0
    %1961 = vmatpush1.msra.mxu0 %v1750
    %1962 = vmatprep.subr.mxu0 0.0
    %1963 = vmatpush1.msra.mxu0 %v1751
    %1964 = vmatprep.subr.mxu0 0.0
    %1965 = vmatpush1.msra.mxu0 %v1752
    %1966 = vmatprep.subr.mxu0 0.0
    %1967 = vmatpush1.msra.mxu0 %v1753
    %1968 = vmatprep.mubr.f32.mxu0 %v1681
    %1969 = vmatmul.mubr.f32.gmra.mrb[0].mxu0 %v1679
    %v1970 = vpop.f32.mrb[0].mxu0
    %v1971 = vadd.f32 %v1901, %v1970
    %v1972 = vpop.f32.mrb[0].mxu0
    %1973 = vdwg.mxu0
    %1974 = vmatprep.subr.mxu0 0.0
    %1975 = vmatpush1.msra.mxu0 %v1754
    %1976 = vmatprep.subr.mxu0 0.0
    %1977 = vmatpush1.msra.mxu0 %v1755
    %1978 = vmatprep.subr.mxu0 0.0
    %1979 = vmatpush1.msra.mxu0 %v1756
    %1980 = vmatprep.subr.mxu0 0.0
    %1981 = vmatpush1.msra.mxu0 %v1757
    %1982 = vmatprep.subr.mxu0 0.0
    %1983 = vmatpush1.msra.mxu0 %v1758
    %1984 = vmatprep.subr.mxu0 0.0
    %1985 = vmatpush1.msra.mxu0 %v1759
    %1986 = vmatprep.subr.mxu0 0.0
    %1987 = vmatpush1.msra.mxu0 %v1760
    %1988 = vmatprep.subr.mxu0 0.0
    %1989 = vmatpush1.msra.mxu0 %v1761
    %1990 = vmatprep.subr.mxu0 0.0
    %1991 = vmatpush1.msra.mxu0 %v1762
    %1992 = vmatprep.subr.mxu0 0.0
    %1993 = vmatpush1.msra.mxu0 %v1763
    %1994 = vmatprep.subr.mxu0 0.0
    %1995 = vmatpush1.msra.mxu0 %v1764
    %1996 = vmatprep.subr.mxu0 0.0
    %1997 = vmatpush1.msra.mxu0 %v1765
    %1998 = vmatprep.subr.mxu0 0.0
    %1999 = vmatpush1.msra.mxu0 %v1766
    %2000 = vmatprep.subr.mxu0 0.0
    %2001 = vmatpush1.msra.mxu0 %v1767
    %2002 = vmatprep.subr.mxu0 0.0
    %2003 = vmatpush1.msra.mxu0 %v1768
    %2004 = vmatprep.subr.mxu0 0.0
    %2005 = vmatpush1.msra.mxu0 %v1769
    %2006 = vmatprep.subr.mxu0 0.0
    %2007 = vmatpush1.msra.mxu0 %v1770
    %2008 = vmatprep.subr.mxu0 0.0
    %2009 = vmatpush1.msra.mxu0 %v1771
    %2010 = vmatprep.subr.mxu0 0.0
    %2011 = vmatpush1.msra.mxu0 %v1772
    %2012 = vmatprep.subr.mxu0 0.0
    %2013 = vmatpush1.msra.mxu0 %v1773
    %2014 = vmatprep.subr.mxu0 0.0
    %2015 = vmatpush1.msra.mxu0 %v1774
    %2016 = vmatprep.subr.mxu0 0.0
    %2017 = vmatpush1.msra.mxu0 %v1775
    %2018 = vmatprep.subr.mxu0 0.0
    %2019 = vmatpush1.msra.mxu0 %v1776
    %2020 = vmatprep.subr.mxu0 0.0
    %2021 = vmatpush1.msra.mxu0 %v1777
    %2022 = vmatprep.subr.mxu0 0.0
    %2023 = vmatpush1.msra.mxu0 %v1778
    %2024 = vmatprep.subr.mxu0 0.0
    %2025 = vmatpush1.msra.mxu0 %v1779
    %2026 = vmatprep.subr.mxu0 0.0
    %2027 = vmatpush1.msra.mxu0 %v1780
    %2028 = vmatprep.subr.mxu0 0.0
    %2029 = vmatpush1.msra.mxu0 %v1781
    %2030 = vmatprep.subr.mxu0 0.0
    %2031 = vmatpush1.msra.mxu0 %v1782
    %2032 = vmatprep.subr.mxu0 0.0
    %2033 = vmatpush1.msra.mxu0 %v1783
    %2034 = vmatprep.subr.mxu0 0.0
    %2035 = vmatpush1.msra.mxu0 %v1784
    %2036 = vmatprep.subr.mxu0 0.0
    %2037 = vmatpush1.msra.mxu0 %v1785
    %2038 = vmatprep.mubr.f32.mxu0 %v1684
    %2039 = vmatmul.mubr.f32.gmra.mrb[0].mxu0 %v1674
    %v2040 = vpop.f32.mrb[0].mxu0
    %v2041 = vadd.f32 %v1971, %v2040
    %v2042 = vpop.f32.mrb[0].mxu0
    %2043 = vdwg.mxu0
    %2044 = vmatprep.subr.mxu0 0.0
    %2045 = vmatpush1.msra.mxu0 %v1786
    %2046 = vmatprep.subr.mxu0 0.0
    %2047 = vmatpush1.msra.mxu0 %v1787
    %2048 = vmatprep.subr.mxu0 0.0
    %2049 = vmatpush1.msra.mxu0 %v1788
    %2050 = vmatprep.subr.mxu0 0.0
    %2051 = vmatpush1.msra.mxu0 %v1789
    %2052 = vmatprep.subr.mxu0 0.0
    %2053 = vmatpush1.msra.mxu0 %v1790
    %2054 = vmatprep.subr.mxu0 0.0
    %2055 = vmatpush1.msra.mxu0 %v1791
    %2056 = vmatprep.subr.mxu0 0.0
    %2057 = vmatpush1.msra.mxu0 %v1792
    %2058 = vmatprep.subr.mxu0 0.0
    %2059 = vmatpush1.msra.mxu0 %v1793
    %2060 = vmatprep.subr.mxu0 0.0
    %2061 = vmatpush1.msra.mxu0 %v1794
    %2062 = vmatprep.subr.mxu0 0.0
    %2063 = vmatpush1.msra.mxu0 %v1795
    %2064 = vmatprep.subr.mxu0 0.0
    %2065 = vmatpush1.msra.mxu0 %v1796
    %2066 = vmatprep.subr.mxu0 0.0
    %2067 = vmatpush1.msra.mxu0 %v1797
    %2068 = vmatprep.subr.mxu0 0.0
    %2069 = vmatpush1.msra.mxu0 %v1798
    %2070 = vmatprep.subr.mxu0 0.0
    %2071 = vmatpush1.msra.mxu0 %v1799
    %2072 = vmatprep.subr.mxu0 0.0
    %2073 = vmatpush1.msra.mxu0 %v1800
    %2074 = vmatprep.subr.mxu0 0.0
    %2075 = vmatpush1.msra.mxu0 %v1801
    %2076 = vmatprep.subr.mxu0 0.0
    %2077 = vmatpush1.msra.mxu0 %v1802
    %2078 = vmatprep.subr.mxu0 0.0
    %2079 = vmatpush1.msra.mxu0 %v1803
    %2080 = vmatprep.subr.mxu0 0.0
    %2081 = vmatpush1.msra.mxu0 %v1804
    %2082 = vmatprep.subr.mxu0 0.0
    %2083 = vmatpush1.msra.mxu0 %v1805
    %2084 = vmatprep.subr.mxu0 0.0
    %2085 = vmatpush1.msra.mxu0 %v1806
    %2086 = vmatprep.subr.mxu0 0.0
    %2087 = vmatpush1.msra.mxu0 %v1807
    %2088 = vmatprep.subr.mxu0 0.0
    %2089 = vmatpush1.msra.mxu0 %v1808
    %2090 = vmatprep.subr.mxu0 0.0
    %2091 = vmatpush1.msra.mxu0 %v1809
    %2092 = vmatprep.subr.mxu0 0.0
    %2093 = vmatpush1.msra.mxu0 %v1810
    %2094 = vmatprep.subr.mxu0 0.0
    %2095 = vmatpush1.msra.mxu0 %v1811
    %2096 = vmatprep.subr.mxu0 0.0
    %2097 = vmatpush1.msra.mxu0 %v1812
    %2098 = vmatprep.subr.mxu0 0.0
    %2099 = vmatpush1.msra.mxu0 %v1813
    %2100 = vmatprep.subr.mxu0 0.0
    %2101 = vmatpush1.msra.mxu0 %v1814
    %2102 = vmatprep.subr.mxu0 0.0
    %2103 = vmatpush1.msra.mxu0 %v1815
    %2104 = vmatprep.subr.mxu0 0.0
    %2105 = vmatpush1.msra.mxu0 %v1816
    %2106 = vmatprep.subr.mxu0 0.0
    %2107 = vmatpush1.msra.mxu0 %v1817
    %2108 = vmatprep.mubr.f32.mxu0 %v1688
    %2109 = vmatmul.mubr.f32.gmra.mrb[0].mxu0 %v1686
    %v2110 = vpop.f32.mrb[0].mxu0
    %v2111 = vadd.f32 %v2041, %v2110
    %v2112 = vpop.f32.mrb[0].mxu0
    %2113 = vdwg.mxu0
    %2114 = vmatprep.subr.mxu0 0.0
    %2115 = vmatpush1.msra.mxu0 %v1818
    %2116 = vmatprep.subr.mxu0 0.0
    %2117 = vmatpush1.msra.mxu0 %v1819
    %2118 = vmatprep.subr.mxu0 0.0
    %2119 = vmatpush1.msra.mxu0 %v1820
    %2120 = vmatprep.subr.mxu0 0.0
    %2121 = vmatpush1.msra.mxu0 %v1821
    %2122 = vmatprep.subr.mxu0 0.0
    %2123 = vmatpush1.msra.mxu0 %v1822
    %2124 = vmatprep.subr.mxu0 0.0
    %2125 = vmatpush1.msra.mxu0 %v1823
    %2126 = vmatprep.subr.mxu0 0.0
    %2127 = vmatpush1.msra.mxu0 %v1824
    %2128 = vmatprep.subr.mxu0 0.0
    %2129 = vmatpush1.msra.mxu0 %v1825
    %2130 = vmatprep.subr.mxu0 0.0
    %2131 = vmatpush1.msra.mxu0 %v1826
    %2132 = vmatprep.subr.mxu0 0.0
    %2133 = vmatpush1.msra.mxu0 %v1827
    %2134 = vmatprep.subr.mxu0 0.0
    %2135 = vmatpush1.msra.mxu0 %v1828
    %2136 = vmatprep.subr.mxu0 0.0
    %2137 = vmatpush1.msra.mxu0 %v1829
    %2138 = vmatprep.subr.mxu0 0.0
    %2139 = vmatpush1.msra.mxu0 %v1830
    %2140 = vmatprep.subr.mxu0 0.0
    %2141 = vmatpush1.msra.mxu0 %v1831
    %2142 = vmatprep.subr.mxu0 0.0
    %2143 = vmatpush1.msra.mxu0 %v1832
    %2144 = vmatprep.subr.mxu0 0.0
    %2145 = vmatpush1.msra.mxu0 %v1833
    %2146 = vmatprep.subr.mxu0 0.0
    %2147 = vmatpush1.msra.mxu0 0.0
    %2148 = vmatprep.subr.mxu0 0.0
    %2149 = vmatpush1.msra.mxu0 0.0
    %2150 = vmatprep.subr.mxu0 0.0
    %2151 = vmatpush1.msra.mxu0 0.0
    %2152 = vmatprep.subr.mxu0 0.0
    %2153 = vmatpush1.msra.mxu0 0.0
    %2154 = vmatprep.subr.mxu0 0.0
    %2155 = vmatpush1.msra.mxu0 0.0
    %2156 = vmatprep.subr.mxu0 0.0
    %2157 = vmatpush1.msra.mxu0 0.0
    %2158 = vmatprep.subr.mxu0 0.0
    %2159 = vmatpush1.msra.mxu0 0.0
    %2160 = vmatprep.subr.mxu0 0.0
    %2161 = vmatpush1.msra.mxu0 0.0
    %2162 = vmatprep.subr.mxu0 0.0
    %2163 = vmatpush1.msra.mxu0 0.0
    %2164 = vmatprep.subr.mxu0 0.0
    %2165 = vmatpush1.msra.mxu0 0.0
    %2166 = vmatprep.subr.mxu0 0.0
    %2167 = vmatpush1.msra.mxu0 0.0
    %2168 = vmatprep.subr.mxu0 0.0
    %2169 = vmatpush1.msra.mxu0 0.0
    %2170 = vmatprep.subr.mxu0 0.0
    %2171 = vmatpush1.msra.mxu0 0.0
    %2172 = vmatprep.subr.mxu0 0.0
    %2173 = vmatpush1.msra.mxu0 0.0
    %2174 = vmatprep.subr.mxu0 0.0
    %2175 = vmatpush1.msra.mxu0 0.0
    %2176 = vmatprep.subr.mxu0 0.0
    %2177 = vmatpush1.msra.mxu0 0.0
    %2178 = vmatprep.mubr.f32.mxu0 0.0
    %2179 = vmatmul.mubr.f32.gmra.mrb[0].mxu0 %v1675
    %v2180 = vpop.f32.mrb[0].mxu0
    %v2181 = vadd.f32 %v2111, %v2180
    %v2182 = vpop.f32.mrb[0].mxu0
    %2183 = vdwg.mxu0
    %v2184 = vsel %vm628, %v2181, 0.0
    %v2185 = vrot.slane %v2184, 4
    %v2186 = vadd.f32 %v2184, %v2185
    %v2187 = vrot.slane %v2186, 2
    %v2188 = vadd.f32 %v2186, %v2187
    %v2189 = vrot.slane %v2188, 1
    %v2190 = vadd.f32 %v2188, %v2189
    %v2191 = vmul.f32 %v2190, 0.5
    %v2192 = vmul.f32 %v2181, %v2181
    %v2193 = vsel %vm628, %v2192, 0.0
    %v2194 = vrot.slane %v2193, 4
    %v2195 = vadd.f32 %v2193, %v2194
    %v2196 = vrot.slane %v2195, 2
    %v2197 = vadd.f32 %v2195, %v2196
    %v2198 = vrot.slane %v2197, 1
    %v2199 = vadd.f32 %v2197, %v2198
    %v2200 = vmul.f32 %v2199, 0.5
    %v2201 = vmul.f32 %v2191, %v2191
    %v2202 = vsub.f32 %v2200, %v2201
    %v2203 = vld [vmem:[%s8] sm:$0x1]
    %v2204 = vadd.f32 %v2202, 1e-05
    %v2205 = vrsqrt.pop %v2204
    %v2206 = vmul.f32 %v2203, %v2205
    %v2207 = vld [vmem:[%s9] sm:$0x1]
    %v2208 = vmul.f32 %v2191, %v2206
    %v2209 = vsub.f32 %v2207, %v2208
    %v2211 = vlaneseq
    %v2212 = vshrl.u32 %v2211, 7
    %v2213 = vsub.s32 0, %v2212
    %v2214 = vrot.slane %v2206, %v2213
    %v2216 = vmul.f32 %v2181, %v2214
    %v2218 = vlaneseq
    %v2219 = vshrl.u32 %v2218, 7
    %v2220 = vsub.s32 0, %v2219
    %v2221 = vrot.slane %v2209, %v2220
    %v2223 = vadd.f32 %v2216, %v2221
    %v2224 = vmax.f32 %v2223, 0.0
    %v2225 = vld [vmem:[%s10] sm:$0xff]
    %v2226 = vld [vmem:[%s10 + $0x8] sm:$0xff]
    %v2227 = vld [vmem:[%s10 + $0x10] sm:$0xff]
    %v2228 = vld [vmem:[%s10 + $0x18] sm:$0xff]
    %v2229 = vld [vmem:[%s10 + $0x20] sm:$0xff]
    %v2230 = vld [vmem:[%s10 + $0x28] sm:$0xff]
    %v2231 = vld [vmem:[%s10 + $0x30] sm:$0xff]
    %v2232 = vld [vmem:[%s10 + $0x38] sm:$0xff]
    %v2233 = vld [vmem:[%s10 + $0x40] sm:$0xff]
    %v2234 = vld [vmem:[%s10 + $0x48] sm:$0xff]
    %v2235 = vld [vmem:[%s10 + $0x50] sm:$0xff]
    %v2236 = vld [vmem:[%s10 + $0x58] sm:$0xff]
    %v2237 = vld [vmem:[%s10 + $0x60] sm:$0xff]
    %v2238 = vld [vmem:[%s10 + $0x68] sm:$0xff]
    %v2239 = vld [vmem:[%s10 + $0x70] sm:$0xff]
    %v2240 = vld [vmem:[%s10 + $0x78] sm:$0xff]
    %v2241 = vld [vmem:[%s11] sm:$0x1]
    %v2243 = vlaneseq
    %v2244 = vshrl.u32 %v2243, 7
    %v2245 = vsub.s32 0, %v2244
    %v2246 = vrot.slane %v2241, %v2245
    %2248 = vmatprep.subr.mxu0 0.0
    %2249 = vmatpush1.msra.mxu0 %v2225
    %2250 = vmatprep.subr.mxu0 0.0
    %2251 = vmatpush1.msra.mxu0 %v2226
    %2252 = vmatprep.subr.mxu0 0.0
    %2253 = vmatpush1.msra.mxu0 %v2227
    %2254 = vmatprep.subr.mxu0 0.0
    %2255 = vmatpush1.msra.mxu0 %v2228
    %2256 = vmatprep.subr.mxu0 0.0
    %2257 = vmatpush1.msra.mxu0 %v2229
    %2258 = vmatprep.subr.mxu0 0.0
    %2259 = vmatpush1.msra.mxu0 %v2230
    %2260 = vmatprep.subr.mxu0 0.0
    %2261 = vmatpush1.msra.mxu0 %v2231
    %2262 = vmatprep.subr.mxu0 0.0
    %2263 = vmatpush1.msra.mxu0 %v2232
    %2264 = vmatprep.subr.mxu0 0.0
    %2265 = vmatpush1.msra.mxu0 %v2233
    %2266 = vmatprep.subr.mxu0 0.0
    %2267 = vmatpush1.msra.mxu0 %v2234
    %2268 = vmatprep.subr.mxu0 0.0
    %2269 = vmatpush1.msra.mxu0 %v2235
    %2270 = vmatprep.subr.mxu0 0.0
    %2271 = vmatpush1.msra.mxu0 %v2236
    %2272 = vmatprep.subr.mxu0 0.0
    %2273 = vmatpush1.msra.mxu0 %v2237
    %2274 = vmatprep.subr.mxu0 0.0
    %2275 = vmatpush1.msra.mxu0 %v2238
    %2276 = vmatprep.subr.mxu0 0.0
    %2277 = vmatpush1.msra.mxu0 %v2239
    %2278 = vmatprep.subr.mxu0 0.0
    %2279 = vmatpush1.msra.mxu0 %v2240
    %2280 = vmatprep.subr.mxu0 0.0
    %2281 = vmatpush1.msra.mxu0 0.0
    %2282 = vmatprep.subr.mxu0 0.0
    %2283 = vmatpush1.msra.mxu0 0.0
    %2284 = vmatprep.subr.mxu0 0.0
    %2285 = vmatpush1.msra.mxu0 0.0
    %2286 = vmatprep.subr.mxu0 0.0
    %2287 = vmatpush1.msra.mxu0 0.0
    %2288 = vmatprep.subr.mxu0 0.0
    %2289 = vmatpush1.msra.mxu0 0.0
    %2290 = vmatprep.subr.mxu0 0.0
    %2291 = vmatpush1.msra.mxu0 0.0
    %2292 = vmatprep.subr.mxu0 0.0
    %2293 = vmatpush1.msra.mxu0 0.0
    %2294 = vmatprep.subr.mxu0 0.0
    %2295 = vmatpush1.msra.mxu0 0.0
    %2296 = vmatprep.subr.mxu0 0.0
    %2297 = vmatpush1.msra.mxu0 0.0
    %2298 = vmatprep.subr.mxu0 0.0
    %2299 = vmatpush1.msra.mxu0 0.0
    %2300 = vmatprep.subr.mxu0 0.0
    %2301 = vmatpush1.msra.mxu0 0.0
    %2302 = vmatprep.subr.mxu0 0.0
    %2303 = vmatpush1.msra.mxu0 0.0
    %2304 = vmatprep.subr.mxu0 0.0
    %2305 = vmatpush1.msra.mxu0 0.0
    %2306 = vmatprep.subr.mxu0 0.0
    %2307 = vmatpush1.msra.mxu0 0.0
    %2308 = vmatprep.subr.mxu0 0.0
    %2309 = vmatpush1.msra.mxu0 0.0
    %2310 = vmatprep.subr.mxu0 0.0
    %2311 = vmatpush1.msra.mxu0 0.0
    %2312 = vmatprep.mubr.f32.mxu0 0.0
    %2313 = vmatmul.mubr.f32.gmra.mrb[0].mxu0 %v2224
    %v2314 = vpop.f32.mrb[0].mxu0
    %v2315 = vadd.f32 %v2246, %v2314
    %v2316 = vpop.f32.mrb[0].mxu0
    %2317 = vdwg.mxu0
    %2318 = vst [vmem:[#allocation2] sm:$0x3] %v2315
    // Predicated region
    $region50: #{basic_cnn_forward.1} parent=1 // pred_check
      _
    $region51: #{basic_cnn_forward.1} parent=1 // pred_check_branch
      %2320 = sbr.rel (0) target = $region53
    $region52: #{basic_cnn_forward.1} parent=1 // pred_region
      %s2322 = ssub.s32 32, 32
      %2323 = vsyncadd [#allocation3], %s2322
      %s2325 = sshll.u32 [#allocation2], 4
      %s2326 = int_to_ptr.vmem [resolvable:$true] %s2325
      %2328 = dma.vmem_to_hbm [thread:$0]  %s2326, 32, %s12, [#allocation3]
    $region53: #{basic_cnn_forward.1} parent=1 // pred_fallthru
      _
    // Predicated region
    $region54: #{basic_cnn_forward.1} parent=1 // pred_check
      _
    $region55: #{basic_cnn_forward.1} parent=1 // pred_check_branch
      %2330 = sbr.rel (0) target = $region57
    $region56: #{basic_cnn_forward.1} parent=1 // pred_region
      %2331 = dma.done [#allocation3], 32
    $region57: #{basic_cnn_forward.1} parent=1 // pred_fallthru
      _
    %2332 = vsyncpa [#allocation3], 1

</llo_original>
